<compile_context>
chip_gen: v6e
topology: v6e:2x2x1
jax: 0.10.0
libtpu: 0.0.40
codegen_flags: <defaults>
</compile_context>

<pallas_src>
import functools

import jax
import jax.numpy as jnp
from jax.experimental import pallas as pl
from jax.experimental.pallas import tpu as pltpu

EPS = 1e-5
LANE = 128
TM_DEFAULT = 512  # rows per tile; multiple of 8, sized well inside 32 MiB scoped VMEM


def _round_up(x, m):
    return (x + m - 1) // m * m


def conv_stats_kernel(patches_ref, w_ref, y_ref, psum_ref, psumsq_ref):
    # patches: (TM, Kd_pad) bf16   w: (Kd_pad, C_pad) bf16
    # y: (TM, C_pad) f32           psum/psumsq: (8, C_pad) f32 (per-tile partial stats)
    y = jnp.dot(patches_ref[...], w_ref[...], preferred_element_type=jnp.float32)
    y_ref[...] = y
    s = jnp.sum(y, axis=0, keepdims=True)         # per-channel sum        (1, C_pad)
    s2 = jnp.sum(y * y, axis=0, keepdims=True)    # per-channel sum of sq  (1, C_pad)
    # Sublane-broadcast to an (8, 128)-aligned block so the stats store is unmasked.
    psum_ref[...] = jnp.broadcast_to(s, psum_ref.shape)
    psumsq_ref[...] = jnp.broadcast_to(s2, psumsq_ref.shape)


def bn_relu_kernel(y_ref, scale_ref, shift_ref, out_ref):
    # Folded BatchNorm (scale/shift) + ReLU: one multiply-add pass over the tile.
    out_ref[...] = jnp.maximum(y_ref[...] * scale_ref[...] + shift_ref[...], 0.0)


def conv_block_forward(x_nchw, weight, bias, gamma, beta, *, stride):
    """x_nchw: (N, C_in, H, W); weight: (C_out, C_in, K, K) — PyTorch conventions."""
    del bias  # Conv bias is exactly cancelled by the BatchNorm mean subtraction.

    N, C_in, H, W = x_nchw.shape
    C_out, _, K, _ = weight.shape
    pad = 2
    H_out = (H + 2 * pad - K) // stride + 1
    W_out = (W + 2 * pad - K) // stride + 1
    M = N * H_out * W_out
    Kd = K * K * C_in

    C_pad = _round_up(C_out, LANE)
    Kd_pad = _round_up(Kd, LANE)
    TM = max(8, min(TM_DEFAULT, _round_up(M, 8)))
    num_tiles = pl.cdiv(M, TM)
    M_pad = num_tiles * TM

    # --- glue: layout + im2col in plain JAX (XLA fuses the strided slices) ---
    x_nhwc = jnp.transpose(x_nchw, (0, 2, 3, 1)).astype(jnp.float32)
    x_sp = jnp.pad(x_nhwc, ((0, 0), (pad, pad), (pad, pad), (0, 0)))
    cols = []
    for kh in range(K):
        for kw in range(K):
            cols.append(
                x_sp[:, kh:kh + stride * H_out:stride, kw:kw + stride * W_out:stride, :]
            )
    # (N, H_out, W_out, K*K, C_in) -> (M, Kd), zero-pad to (M_pad, Kd_pad), bf16 operands.
    patches = jnp.stack(cols, axis=-2).reshape(M, Kd)
    patches = jnp.pad(patches, ((0, M_pad - M), (0, Kd_pad - Kd))).astype(jnp.bfloat16)

    # Weight matrix matching patch ordering: (kh*K+kw)*C_in + c -> out channel o
    w_mat = jnp.transpose(weight, (2, 3, 1, 0)).reshape(Kd, C_out).astype(jnp.float32)
    w_mat = jnp.pad(w_mat, ((0, Kd_pad - Kd), (0, C_pad - C_out))).astype(jnp.bfloat16)

    # --- pass 1: tiled conv matmul + per-tile batch statistics ---
    cost1 = pl.CostEstimate(
        flops=2 * M_pad * Kd_pad * C_pad,
        transcendentals=0,
        bytes_accessed=(patches.size * 2 + w_mat.size * 2
                        + M_pad * C_pad * 4 + 2 * num_tiles * 8 * C_pad * 4),
    )
    y, psum, psumsq = pl.pallas_call(
        conv_stats_kernel,
        out_shape=(
            jax.ShapeDtypeStruct((M_pad, C_pad), jnp.float32),
            jax.ShapeDtypeStruct((num_tiles * 8, C_pad), jnp.float32),
            jax.ShapeDtypeStruct((num_tiles * 8, C_pad), jnp.float32),
        ),
        grid=(num_tiles,),
        in_specs=[
            pl.BlockSpec((TM, Kd_pad), lambda i: (i, 0)),
            pl.BlockSpec((Kd_pad, C_pad), lambda i: (0, 0)),
        ],
        out_specs=(
            pl.BlockSpec((TM, C_pad), lambda i: (i, 0)),
            pl.BlockSpec((8, C_pad), lambda i: (i, 0)),
            pl.BlockSpec((8, C_pad), lambda i: (i, 0)),
        ),
        compiler_params=pltpu.CompilerParams(
            dimension_semantics=("parallel",),
            vmem_limit_bytes=32 * 1024 * 1024,
        ),
        cost_estimate=cost1,
    )(patches, w_mat)

    # --- tiny cross-tile reduction + BN fold (per-channel vectors, plain JAX) ---
    total = psum[0::8].sum(axis=0)        # (C_pad,)
    total_sq = psumsq[0::8].sum(axis=0)   # (C_pad,)
    inv_m = 1.0 / jnp.float32(M)          # divide by the REAL row count (padded rows are 0)
    mean = total * inv_m
    var = jnp.maximum(total_sq * inv_m - mean * mean, 0.0)   # biased batch variance
    g = jnp.pad(gamma.astype(jnp.float32), (0, C_pad - C_out))
    b = jnp.pad(beta.astype(jnp.float32), (0, C_pad - C_out))
    scale_v = g * jax.lax.rsqrt(var + EPS)
    shift_v = b - mean * scale_v
    scale = scale_v.reshape(1, C_pad)
    shift = shift_v.reshape(1, C_pad)

    # --- pass 2: tiled scale/shift + ReLU (lane-dense stores) ---
    cost2 = pl.CostEstimate(
        flops=3 * M_pad * C_pad,
        transcendentals=0,
        bytes_accessed=2 * M_pad * C_pad * 4 + 2 * C_pad * 4,
    )
    out_flat = pl.pallas_call(
        bn_relu_kernel,
        out_shape=jax.ShapeDtypeStruct((M_pad, C_pad), jnp.float32),
        grid=(num_tiles,),
        in_specs=[
            pl.BlockSpec((TM, C_pad), lambda i: (i, 0)),
            pl.BlockSpec((1, C_pad), lambda i: (0, 0)),
            pl.BlockSpec((1, C_pad), lambda i: (0, 0)),
        ],
        out_specs=pl.BlockSpec((TM, C_pad), lambda i: (i, 0)),
        compiler_params=pltpu.CompilerParams(
            dimension_semantics=("parallel",),
            vmem_limit_bytes=32 * 1024 * 1024,
        ),
        cost_estimate=cost2,
    )(y, scale, shift)

    # slice off padding, back to NCHW
    out = out_flat[:M, :C_out].reshape(N, H_out, W_out, C_out)
    return jnp.transpose(out, (0, 3, 1, 2))


def _reference(x_nchw, weight, bias, gamma, beta, *, stride):
    """Pure-JAX f32 reference (matches PyTorch ConvBlock in train mode)."""
    y = jax.lax.conv_general_dilated(
        x_nchw.astype(jnp.float32), weight.astype(jnp.float32),
        window_strides=(stride, stride), padding=((2, 2), (2, 2)),
        dimension_numbers=("NCHW", "OIHW", "NCHW"),
    ) + bias.reshape(1, -1, 1, 1)
    mean = jnp.mean(y, axis=(0, 2, 3), keepdims=True)
    var = jnp.mean((y - mean) ** 2, axis=(0, 2, 3), keepdims=True)
    y = (y - mean) * jax.lax.rsqrt(var + EPS)
    y = y * gamma.reshape(1, -1, 1, 1) + beta.reshape(1, -1, 1, 1)
    return jnp.maximum(y, 0.0)


if __name__ == "__main__":
    # ConvBlock(in_channels=4, out_channels=8, kernel_size=3, stride=1), small shapes.
    N, C_in, H, W = 2, 4, 16, 16
    C_out, K, stride = 8, 3, 1

    key = jax.random.PRNGKey(0)
    kx, kw, kb = jax.random.split(key, 3)
    x = jax.random.normal(kx, (N, C_in, H, W), dtype=jnp.float32)
    weight = jax.random.normal(kw, (C_out, C_in, K, K), dtype=jnp.float32) * 0.1
    bias = jax.random.normal(kb, (C_out,), dtype=jnp.float32) * 0.1
    gamma = jnp.ones((C_out,), dtype=jnp.float32)   # BatchNorm2d init
    beta = jnp.zeros((C_out,), dtype=jnp.float32)   # BatchNorm2d init

    fwd = jax.jit(functools.partial(conv_block_forward, stride=stride))
    out = jax.block_until_ready(fwd(x, weight, bias, gamma, beta))

    ref = _reference(x, weight, bias, gamma, beta, stride=stride)
    assert out.shape == ref.shape, (out.shape, ref.shape)
    err = float(jnp.max(jnp.abs(out - ref)))
    # bf16 MXU operands (f32 accumulation, f32 BN math) => tolerance looser than pure-f32.
    assert err < 5e-2, err

    print("KERNEL_OK")
</pallas_src>

<mosaic_0001>
module attributes {stable_mosaic.version = 11 : i64} {
  func.func @conv_stats_kernel(%arg0: i32, %arg1: memref<512x128xbf16, #tpu.memory_space<vmem>>, %arg2: memref<128x128xbf16, #tpu.memory_space<vmem>>, %arg3: memref<512x128xf32, #tpu.memory_space<vmem>>, %arg4: memref<8x128xf32, #tpu.memory_space<vmem>>, %arg5: memref<8x128xf32, #tpu.memory_space<vmem>>) attributes {dimension_semantics = [#tpu.dimension_semantics<parallel>], iteration_bounds = array<i64: 2>, scalar_prefetch = 0 : i64, scratch_operands = 0 : i64, tpu.core_type = #tpu.core_type<tc>, window_params = [{transform_indices = @transform_0, window_bounds = array<i64: 512, 128>}, {pipeline_mode = #tpu.pipeline_mode<synchronous>, transform_indices = @transform_1, window_bounds = array<i64: 128, 128>}, {transform_indices = @transform_2, window_bounds = array<i64: 512, 128>}, {transform_indices = @transform_3, window_bounds = array<i64: 8, 128>}, {transform_indices = @transform_4, window_bounds = array<i64: 8, 128>}]} {
    %c0 = arith.constant 0 : index
    %c0_0 = arith.constant 0 : index
    %0 = vector.load %arg1[%c0, %c0_0] : memref<512x128xbf16, #tpu.memory_space<vmem>>, vector<512x128xbf16>
    %c0_1 = arith.constant 0 : index
    %c0_2 = arith.constant 0 : index
    %1 = vector.load %arg2[%c0_1, %c0_2] : memref<128x128xbf16, #tpu.memory_space<vmem>>, vector<128x128xbf16>
    %cst = arith.constant dense<0.000000e+00> : vector<512x128xf32>
    %2 = tpu.matmul %0, %1, %cst {dimension_numbers = #tpu.dot_dimension_numbers<[1], [0], [0], [1], [0, 0, 1, 1], [], []>} : vector<512x128xbf16>, vector<128x128xbf16>, vector<512x128xf32> -> vector<512x128xf32>
    %c0_3 = arith.constant 0 : index
    %c0_4 = arith.constant 0 : index
    %3 = vector.load %arg3[%c0_3, %c0_4] : memref<512x128xf32, #tpu.memory_space<vmem>>, vector<512x128xf32>
    tpu.vector_store %arg3[%c0_3, %c0_4], %2 {strides = array<i32>} : memref<512x128xf32, #tpu.memory_space<vmem>>, vector<512x128xf32>,
    %cst_5 = arith.constant dense<0.000000e+00> : vector<128xf32>
    %4 = vector.multi_reduction <add>, %2, %cst_5 [0] : vector<512x128xf32> to vector<128xf32>
    %5 = vector.shape_cast %4 : vector<128xf32> to vector<1x128xf32>
    %6 = arith.mulf %2, %2 : vector<512x128xf32>
    %cst_6 = arith.constant dense<0.000000e+00> : vector<128xf32>
    %7 = vector.multi_reduction <add>, %6, %cst_6 [0] : vector<512x128xf32> to vector<128xf32>
    %8 = vector.shape_cast %7 : vector<128xf32> to vector<1x128xf32>
    %9 = vector.shape_cast %5 : vector<1x128xf32> to vector<1x128xf32>
    %10 = vector.broadcast %9 : vector<1x128xf32> to vector<8x128xf32>
    %c0_7 = arith.constant 0 : index
    %c0_8 = arith.constant 0 : index
    %11 = vector.load %arg4[%c0_7, %c0_8] : memref<8x128xf32, #tpu.memory_space<vmem>>, vector<8x128xf32>
    tpu.vector_store %arg4[%c0_7, %c0_8], %10 {strides = array<i32>} : memref<8x128xf32, #tpu.memory_space<vmem>>, vector<8x128xf32>,
    %12 = vector.shape_cast %8 : vector<1x128xf32> to vector<1x128xf32>
    %13 = vector.broadcast %12 : vector<1x128xf32> to vector<8x128xf32>
    %c0_9 = arith.constant 0 : index
    %c0_10 = arith.constant 0 : index
    %14 = vector.load %arg5[%c0_9, %c0_10] : memref<8x128xf32, #tpu.memory_space<vmem>>, vector<8x128xf32>
    tpu.vector_store %arg5[%c0_9, %c0_10], %13 {strides = array<i32>} : memref<8x128xf32, #tpu.memory_space<vmem>>, vector<8x128xf32>,
    return
  }
  func.func @transform_0(%arg0: i32) -> (i32, i32) {
    %c0_i32 = arith.constant 0 : i32
    %c0_i32_0 = arith.constant 0 : i32
    return %arg0, %c0_i32 : i32, i32
  }
  func.func @transform_1(%arg0: i32) -> (i32, i32) {
    %c0_i32 = arith.constant 0 : i32
    %c0_i32_0 = arith.constant 0 : i32
    %c0_i32_1 = arith.constant 0 : i32
    return %c0_i32, %c0_i32_0 : i32, i32
  }
  func.func @transform_2(%arg0: i32) -> (i32, i32) {
    %c0_i32 = arith.constant 0 : i32
    %c0_i32_0 = arith.constant 0 : i32
    return %arg0, %c0_i32 : i32, i32
  }
  func.func @transform_3(%arg0: i32) -> (i32, i32) {
    %c0_i32 = arith.constant 0 : i32
    %c0_i32_0 = arith.constant 0 : i32
    return %arg0, %c0_i32 : i32, i32
  }
  func.func @transform_4(%arg0: i32) -> (i32, i32) {
    %c0_i32 = arith.constant 0 : i32
    %c0_i32_0 = arith.constant 0 : i32
    return %arg0, %c0_i32 : i32, i32
  }
}

module attributes {stable_mosaic.version = 11 : i64} {
  func.func @bn_relu_kernel(%arg0: i32, %arg1: memref<512x128xf32, #tpu.memory_space<vmem>>, %arg2: memref<1x128xf32, #tpu.memory_space<vmem>>, %arg3: memref<1x128xf32, #tpu.memory_space<vmem>>, %arg4: memref<512x128xf32, #tpu.memory_space<vmem>>) attributes {dimension_semantics = [#tpu.dimension_semantics<parallel>], iteration_bounds = array<i64: 2>, scalar_prefetch = 0 : i64, scratch_operands = 0 : i64, tpu.core_type = #tpu.core_type<tc>, window_params = [{transform_indices = @transform_0, window_bounds = array<i64: 512, 128>}, {pipeline_mode = #tpu.pipeline_mode<synchronous>, transform_indices = @transform_1, window_bounds = array<i64: 1, 128>}, {pipeline_mode = #tpu.pipeline_mode<synchronous>, transform_indices = @transform_2, window_bounds = array<i64: 1, 128>}, {transform_indices = @transform_3, window_bounds = array<i64: 512, 128>}]} {
    %c0 = arith.constant 0 : index
    %c0_0 = arith.constant 0 : index
    %0 = vector.load %arg1[%c0, %c0_0] : memref<512x128xf32, #tpu.memory_space<vmem>>, vector<512x128xf32>
    %c0_1 = arith.constant 0 : index
    %c0_2 = arith.constant 0 : index
    %1 = vector.load %arg2[%c0_1, %c0_2] : memref<1x128xf32, #tpu.memory_space<vmem>>, vector<1x128xf32>
    %2 = vector.broadcast %1 : vector<1x128xf32> to vector<512x128xf32>
    %3 = arith.mulf %0, %2 : vector<512x128xf32>
    %c0_3 = arith.constant 0 : index
    %c0_4 = arith.constant 0 : index
    %4 = vector.load %arg3[%c0_3, %c0_4] : memref<1x128xf32, #tpu.memory_space<vmem>>, vector<1x128xf32>
    %5 = vector.broadcast %4 : vector<1x128xf32> to vector<512x128xf32>
    %6 = arith.addf %3, %5 : vector<512x128xf32>
    %cst = arith.constant 0.000000e+00 : f32
    %7 = vector.broadcast %cst : f32 to vector<512x128xf32>
    %8 = arith.maximumf %6, %7 : vector<512x128xf32>
    %c0_5 = arith.constant 0 : index
    %c0_6 = arith.constant 0 : index
    %9 = vector.load %arg4[%c0_5, %c0_6] : memref<512x128xf32, #tpu.memory_space<vmem>>, vector<512x128xf32>
    tpu.vector_store %arg4[%c0_5, %c0_6], %8 {strides = array<i32>} : memref<512x128xf32, #tpu.memory_space<vmem>>, vector<512x128xf32>,
    return
  }
  func.func @transform_0(%arg0: i32) -> (i32, i32) {
    %c0_i32 = arith.constant 0 : i32
    %c0_i32_0 = arith.constant 0 : i32
    return %arg0, %c0_i32 : i32, i32
  }
  func.func @transform_1(%arg0: i32) -> (i32, i32) {
    %c0_i32 = arith.constant 0 : i32
    %c0_i32_0 = arith.constant 0 : i32
    %c0_i32_1 = arith.constant 0 : i32
    return %c0_i32, %c0_i32_0 : i32, i32
  }
  func.func @transform_2(%arg0: i32) -> (i32, i32) {
    %c0_i32 = arith.constant 0 : i32
    %c0_i32_0 = arith.constant 0 : i32
    %c0_i32_1 = arith.constant 0 : i32
    return %c0_i32, %c0_i32_0 : i32, i32
  }
  func.func @transform_3(%arg0: i32) -> (i32, i32) {
    %c0_i32 = arith.constant 0 : i32
    %c0_i32_0 = arith.constant 0 : i32
    return %arg0, %c0_i32 : i32, i32
  }
}

</mosaic_0001>

<llo_original>
// kernel: conv_block_forward.3
$region0: #{conv_block_forward.3}
  #allocation0 [shape = 'u32[]', space=smem, size = 0x4, offset = 0x4, fixed_abs, tag = 'smem constant byte address 0x4 - core index']
  #allocation1 [shape = 'u32[144,128]{1,0:T(1,128)}', space=vmem, size = 0x12000, scoped, tag = 'internal scratch']
  %s0 = inlined_call_operand.vmem [shape: f32[1024,128], index: 0, kind: input, shape index: {}]
  %s1 = inlined_call_operand.vmem [shape: f32[1,128], index: 1, kind: input, shape index: {}]
  %s2 = inlined_call_operand.vmem [shape: f32[1,128], index: 2, kind: input, shape index: {}]
  %s3 = inlined_call_operand.vmem [shape: f32[1024,128], index: 3, kind: output, shape index: {}]
  %s4 = sld [smem:[#allocation0]]
  $region45: #{conv_block_forward.3} parent=0
    _
  %s6 = ssub.s32 1, %s4
  %s7 = scalar_select 0, %s6, %s4
  loop: start=0, step=1, limit=4
  $region2: #{conv_block_forward.3} parent=0 // loop_pre_header
    _
  $region3: #{conv_block_forward.3} parent=0 // loop_header
    %s9 = sphi 0, %s13
    %p10 = scmp.ge.s32.totalorder %s9, 4
    %s19 = sphi 0, %s21
    %s22 = sphi 0, %s19
    %s23 = sphi 0, %s22
    %s39 = sphi 0, %s23
    %s43 = sphi 0, %s43
    %s45 = sphi 0, %s43
    %s46 = sphi 0, %s45
    %s60 = sphi 0, %s46
    %s64 = sphi 0, %s64
    %s66 = sphi 0, %s64
    %s67 = sphi 0, %s66
    %s81 = sphi 0, %s67
    %s87 = sphi 0, %s89
    %s90 = sphi 0, %s87
    %s91 = sphi 0, %s90
    %s107 = sphi 0, %s91
  $region4: #{conv_block_forward.3} parent=0 // loop_header_branch
    %12 = sbr.rel (%p10) target = $region8
  $region5: #{conv_block_forward.3} parent=0 // loop_body
    %s14 = ssub.s32 %s9, 1
    %s15 = ssub.s32 %s9, 2
    %s16 = sadd.s32 %s9, 1
    %s17 = ssub.s32 %s9, %s16
    %p18 = scmp.eq.s32.totalorder %s17, 0
    %s20 = sadd.s32 %s19, 1
    %s21 = scalar_select %p18, %s19, %s20
    %p24 = pneg %p18
    %p25 = scmp.eq.s32.totalorder %s9, 1
    %p26 = por %p24, %p25
    %p27 = scmp.ne.s32.totalorder %s19, %s22
    %p28 = scmp.eq.s32.totalorder %s9, 0
    %p29 = por %p27, %p28
    %p30 = scmp.ne.s32.totalorder %s19, %s22
    %p31 = scmp.eq.s32.totalorder %s14, 1
    %p32 = por %p30, %p31
    %p33 = scmp.ne.s32.totalorder %s22, %s23
    %p34 = scmp.eq.s32.totalorder %s14, 0
    %p35 = por %p33, %p34
    %p36 = scmp.ne.s32.totalorder %s22, %s23
    %p37 = scmp.eq.s32.totalorder %s15, 1
    %p38 = por %p36, %p37
    %p40 = scmp.ne.s32.totalorder %s23, %s39
    %p41 = scmp.eq.s32.totalorder %s15, 0
    %p42 = por %p40, %p41
    %s44 = sadd.s32 %s43, 1
    %p47 = scmp.eq.s32.totalorder %s9, 1
    %p48 = scmp.ne.s32.totalorder %s43, %s45
    %p49 = scmp.eq.s32.totalorder %s9, 0
    %p50 = por %p48, %p49
    %p51 = scmp.ne.s32.totalorder %s43, %s45
    %p52 = scmp.eq.s32.totalorder %s14, 1
    %p53 = por %p51, %p52
    %p54 = scmp.ne.s32.totalorder %s45, %s46
    %p55 = scmp.eq.s32.totalorder %s14, 0
    %p56 = por %p54, %p55
    %p57 = scmp.ne.s32.totalorder %s45, %s46
    %p58 = scmp.eq.s32.totalorder %s15, 1
    %p59 = por %p57, %p58
    %p61 = scmp.ne.s32.totalorder %s46, %s60
    %p62 = scmp.eq.s32.totalorder %s15, 0
    %p63 = por %p61, %p62
    %s65 = sadd.s32 %s64, 1
    %p68 = scmp.eq.s32.totalorder %s9, 1
    %p69 = scmp.ne.s32.totalorder %s64, %s66
    %p70 = scmp.eq.s32.totalorder %s9, 0
    %p71 = por %p69, %p70
    %p72 = scmp.ne.s32.totalorder %s64, %s66
    %p73 = scmp.eq.s32.totalorder %s14, 1
    %p74 = por %p72, %p73
    %p75 = scmp.ne.s32.totalorder %s66, %s67
    %p76 = scmp.eq.s32.totalorder %s14, 0
    %p77 = por %p75, %p76
    %p78 = scmp.ne.s32.totalorder %s66, %s67
    %p79 = scmp.eq.s32.totalorder %s15, 1
    %p80 = por %p78, %p79
    %p82 = scmp.ne.s32.totalorder %s67, %s81
    %p83 = scmp.eq.s32.totalorder %s15, 0
    %p84 = por %p82, %p83
    %s85 = ssub.s32 %s9, %s16
    %p86 = scmp.eq.s32.totalorder %s85, 0
    %s88 = sadd.s32 %s87, 1
    %s89 = scalar_select %p86, %s87, %s88
    %p92 = pneg %p86
    %p93 = scmp.eq.s32.totalorder %s9, 1
    %p94 = por %p92, %p93
    %p95 = scmp.ne.s32.totalorder %s87, %s90
    %p96 = scmp.eq.s32.totalorder %s9, 0
    %p97 = por %p95, %p96
    %p98 = scmp.ne.s32.totalorder %s87, %s90
    %p99 = scmp.eq.s32.totalorder %s14, 1
    %p100 = por %p98, %p99
    %p101 = scmp.ne.s32.totalorder %s90, %s91
    %p102 = scmp.eq.s32.totalorder %s14, 0
    %p103 = por %p101, %p102
    %p104 = scmp.ne.s32.totalorder %s90, %s91
    %p105 = scmp.eq.s32.totalorder %s15, 1
    %p106 = por %p104, %p105
    %p108 = scmp.ne.s32.totalorder %s91, %s107
    %p109 = scmp.eq.s32.totalorder %s15, 0
    %p110 = por %p108, %p109
    %p111 = scmp.le.s32.totalorder 1, %s9
    %p112 = scmp.lt.s32.totalorder %s9, 3
    %p113 = pnand %p111, %p112
    %p114 = pneg %p113
    // Predicated region
    $region9: #{conv_block_forward.3} parent=5 // pred_check
      _
    $region10: #{conv_block_forward.3} parent=5 // pred_check_branch
      %116 = sbr.rel (%p113) target = $region12
    $region11: #{conv_block_forward.3} parent=5 // pred_region
      %s117 = ssub.s32 %s9, 1
      // Predicated region
      $region13: #{conv_block_forward.3} parent=11 // pred_check
        %p118 = pneg %p56
      $region14: #{conv_block_forward.3} parent=11 // pred_check_branch
        %120 = sbr.rel (%p118) target = $region16
      $region15: #{conv_block_forward.3} parent=11 // pred_region
        _
      $region16: #{conv_block_forward.3} parent=11 // pred_fallthru
        _
      // Predicated region
      $region17: #{conv_block_forward.3} parent=11 // pred_check
        %p121 = pneg %p77
      $region18: #{conv_block_forward.3} parent=11 // pred_check_branch
        %123 = sbr.rel (%p121) target = $region20
      $region19: #{conv_block_forward.3} parent=11 // pred_region
        _
      $region20: #{conv_block_forward.3} parent=11 // pred_fallthru
        _
    $region12: #{conv_block_forward.3} parent=5 // pred_fallthru
      _
    %p124 = scmp.lt.s32.totalorder %s9, 2
    // Predicated region
    $region21: #{conv_block_forward.3} parent=5 // pred_check
      %p125 = pneg %p124
    $region22: #{conv_block_forward.3} parent=5 // pred_check_branch
      %127 = sbr.rel (%p125) target = $region24
    $region23: #{conv_block_forward.3} parent=5 // pred_region
      // Predicated region
      $region25: #{conv_block_forward.3} parent=23 // pred_check
        %p128 = pneg %p29
      $region26: #{conv_block_forward.3} parent=23 // pred_check_branch
        %130 = sbr.rel (%p128) target = $region28
      $region27: #{conv_block_forward.3} parent=23 // pred_region
        %s131 = smul.u32 64, %s9
        %p132 = scmp.lt.s32.totalorder %s131, 127
        %s133 = scalar_select %p132, %s131, 127
        %s134 = smul.addr %s133, 8
        %s135 = scalar_lea.vmem %s0, %s134
        %s136 = smul.u32 64, %s9
      $region28: #{conv_block_forward.3} parent=23 // pred_fallthru
        _
    $region24: #{conv_block_forward.3} parent=5 // pred_fallthru
      _
    %p137 = scmp.le.s32.totalorder 1, %s9
    %p138 = scmp.lt.s32.totalorder %s9, 3
    %p139 = pnand %p137, %p138
    %p140 = pneg %p139
    // Predicated region
    $region29: #{conv_block_forward.3} parent=5 // pred_check
      _
    $region30: #{conv_block_forward.3} parent=5 // pred_check_branch
      %142 = sbr.rel (%p139) target = $region32
    $region31: #{conv_block_forward.3} parent=5 // pred_region
      %s143 = ssub.s32 %s9, 1
      %s144 = smul.u32 64, %s14
      %p145 = scmp.lt.s32.totalorder %s144, 127
      %s146 = scalar_select %p145, %s144, 127
      %s147 = smul.addr %s146, 8
      %s148 = scalar_lea.vmem %s0, %s147
      %p149 = pneg %p35
      %p150 = pneg %p32
      %p151 = pneg %p56
      %p152 = pneg %p53
      %p153 = pneg %p77
      %p154 = pneg %p74
      %p155 = pneg %p103
      %p156 = pneg %p100
      %s157 = smul.u32 64, %s14
      %p158 = scmp.lt.s32.totalorder %s157, 127
      %s159 = scalar_select %p158, %s157, 127
      %s160 = smul.addr %s159, 8
      %s161 = scalar_lea.vmem %s3, %s160
      %s162 = smul.u32 64, %s14
      %p163 = scmp.lt.s32.totalorder %s162, 127
      %s164 = scalar_select %p163, %s162, 127
      %s165 = smul.addr %s164, 8
      %s166 = scalar_lea.vmem %s0, %s165
      %s167 = smul.u32 64, %s14
      %s168 = smul.u32 64, %s14
      %p169 = scmp.lt.s32.totalorder %s168, 127
      %s170 = scalar_select %p169, %s168, 127
      %s171 = smul.addr %s170, 8
      %s172 = scalar_lea.vmem %s3, %s171
      %s173 = smul.u32 64, %s14
      %v174 = vld [vmem:[%s166] sm:$0xff]
      %v175 = vld [vmem:[%s166 + $0x8] sm:$0xff]
      %v176 = vld [vmem:[%s166 + $0x10] sm:$0xff]
      %v177 = vld [vmem:[%s166 + $0x18] sm:$0xff]
      %v178 = vld [vmem:[%s166 + $0x20] sm:$0xff]
      %v179 = vld [vmem:[%s166 + $0x28] sm:$0xff]
      %v180 = vld [vmem:[%s166 + $0x30] sm:$0xff]
      %v181 = vld [vmem:[%s166 + $0x38] sm:$0xff]
      %v182 = vld [vmem:[%s166 + $0x40] sm:$0xff]
      %v183 = vld [vmem:[%s166 + $0x48] sm:$0xff]
      %v184 = vld [vmem:[%s166 + $0x50] sm:$0xff]
      %v185 = vld [vmem:[%s166 + $0x58] sm:$0xff]
      %v186 = vld [vmem:[%s166 + $0x60] sm:$0xff]
      %v187 = vld [vmem:[%s166 + $0x68] sm:$0xff]
      %v188 = vld [vmem:[%s166 + $0x70] sm:$0xff]
      %v189 = vld [vmem:[%s166 + $0x78] sm:$0xff]
      %v190 = vld [vmem:[%s166 + $0x80] sm:$0xff]
      %v191 = vld [vmem:[%s166 + $0x88] sm:$0xff]
      %v192 = vld [vmem:[%s166 + $0x90] sm:$0xff]
      %v193 = vld [vmem:[%s166 + $0x98] sm:$0xff]
      %v194 = vld [vmem:[%s166 + $0xa0] sm:$0xff]
      %v195 = vld [vmem:[%s166 + $0xa8] sm:$0xff]
      %v196 = vld [vmem:[%s166 + $0xb0] sm:$0xff]
      %v197 = vld [vmem:[%s166 + $0xb8] sm:$0xff]
      %v198 = vld [vmem:[%s166 + $0xc0] sm:$0xff]
      %v199 = vld [vmem:[%s166 + $0xc8] sm:$0xff]
      %v200 = vld [vmem:[%s166 + $0xd0] sm:$0xff]
      %v201 = vld [vmem:[%s166 + $0xd8] sm:$0xff]
      %v202 = vld [vmem:[%s166 + $0xe0] sm:$0xff]
      %v203 = vld [vmem:[%s166 + $0xe8] sm:$0xff]
      %v204 = vld [vmem:[%s166 + $0xf0] sm:$0xff]
      %v205 = vld [vmem:[%s166 + $0xf8] sm:$0xff]
      %v206 = vld [vmem:[%s166 + $0x100] sm:$0xff]
      %v207 = vld [vmem:[%s166 + $0x108] sm:$0xff]
      %v208 = vld [vmem:[%s166 + $0x110] sm:$0xff]
      %v209 = vld [vmem:[%s166 + $0x118] sm:$0xff]
      %v210 = vld [vmem:[%s166 + $0x120] sm:$0xff]
      %v211 = vld [vmem:[%s166 + $0x128] sm:$0xff]
      %v212 = vld [vmem:[%s166 + $0x130] sm:$0xff]
      %v213 = vld [vmem:[%s166 + $0x138] sm:$0xff]
      %v214 = vld [vmem:[%s166 + $0x140] sm:$0xff]
      %v215 = vld [vmem:[%s166 + $0x148] sm:$0xff]
      %v216 = vld [vmem:[%s166 + $0x150] sm:$0xff]
      %v217 = vld [vmem:[%s166 + $0x158] sm:$0xff]
      %v218 = vld [vmem:[%s166 + $0x160] sm:$0xff]
      %v219 = vld [vmem:[%s166 + $0x168] sm:$0xff]
      %v220 = vld [vmem:[%s166 + $0x170] sm:$0xff]
      %v221 = vld [vmem:[%s166 + $0x178] sm:$0xff]
      %v222 = vld [vmem:[%s166 + $0x180] sm:$0xff]
      %v223 = vld [vmem:[%s166 + $0x188] sm:$0xff]
      %v224 = vld [vmem:[%s166 + $0x190] sm:$0xff]
      %v225 = vld [vmem:[%s166 + $0x198] sm:$0xff]
      %v226 = vld [vmem:[%s166 + $0x1a0] sm:$0xff]
      %v227 = vld [vmem:[%s166 + $0x1a8] sm:$0xff]
      %v228 = vld [vmem:[%s166 + $0x1b0] sm:$0xff]
      %v229 = vld [vmem:[%s166 + $0x1b8] sm:$0xff]
      %v230 = vld [vmem:[%s166 + $0x1c0] sm:$0xff]
      %v231 = vld [vmem:[%s166 + $0x1c8] sm:$0xff]
      %v232 = vld [vmem:[%s166 + $0x1d0] sm:$0xff]
      %v233 = vld [vmem:[%s166 + $0x1d8] sm:$0xff]
      %v234 = vld [vmem:[%s166 + $0x1e0] sm:$0xff]
      %v235 = vld [vmem:[%s166 + $0x1e8] sm:$0xff]
      %v236 = vld [vmem:[%s166 + $0x1f0] sm:$0xff]
      %v237 = vld [vmem:[%s166 + $0x1f8] sm:$0xff]
      %v238 = vld [vmem:[%s1] sm:$0x1]
      %v240 = vlaneseq
      %v241 = vshrl.u32 %v240, 7
      %v242 = vsub.s32 0, %v241
      %v243 = vrot.slane %v238, %v242
      %v245 = vmul.f32 %v174, %v243
      %v246 = vmul.f32 %v175, %v243
      %v247 = vmul.f32 %v176, %v243
      %v248 = vmul.f32 %v177, %v243
      %v249 = vmul.f32 %v178, %v243
      %v250 = vmul.f32 %v179, %v243
      %v251 = vmul.f32 %v180, %v243
      %v252 = vmul.f32 %v181, %v243
      %v253 = vmul.f32 %v182, %v243
      %v254 = vmul.f32 %v183, %v243
      %v255 = vmul.f32 %v184, %v243
      %v256 = vmul.f32 %v185, %v243
      %v257 = vmul.f32 %v186, %v243
      %v258 = vmul.f32 %v187, %v243
      %v259 = vmul.f32 %v188, %v243
      %v260 = vmul.f32 %v189, %v243
      %v261 = vmul.f32 %v190, %v243
      %v262 = vmul.f32 %v191, %v243
      %v263 = vmul.f32 %v192, %v243
      %v264 = vmul.f32 %v193, %v243
      %v265 = vmul.f32 %v194, %v243
      %v266 = vmul.f32 %v195, %v243
      %v267 = vmul.f32 %v196, %v243
      %v268 = vmul.f32 %v197, %v243
      %v269 = vmul.f32 %v198, %v243
      %v270 = vmul.f32 %v199, %v243
      %v271 = vmul.f32 %v200, %v243
      %v272 = vmul.f32 %v201, %v243
      %v273 = vmul.f32 %v202, %v243
      %v274 = vmul.f32 %v203, %v243
      %v275 = vmul.f32 %v204, %v243
      %v276 = vmul.f32 %v205, %v243
      %v277 = vmul.f32 %v206, %v243
      %v278 = vmul.f32 %v207, %v243
      %v279 = vmul.f32 %v208, %v243
      %v280 = vmul.f32 %v209, %v243
      %v281 = vmul.f32 %v210, %v243
      %v282 = vmul.f32 %v211, %v243
      %v283 = vmul.f32 %v212, %v243
      %v284 = vmul.f32 %v213, %v243
      %v285 = vmul.f32 %v214, %v243
      %v286 = vmul.f32 %v215, %v243
      %v287 = vmul.f32 %v216, %v243
      %v288 = vmul.f32 %v217, %v243
      %v289 = vmul.f32 %v218, %v243
      %v290 = vmul.f32 %v219, %v243
      %v291 = vmul.f32 %v220, %v243
      %v292 = vmul.f32 %v221, %v243
      %v293 = vmul.f32 %v222, %v243
      %v294 = vmul.f32 %v223, %v243
      %v295 = vmul.f32 %v224, %v243
      %v296 = vmul.f32 %v225, %v243
      %v297 = vmul.f32 %v226, %v243
      %v298 = vmul.f32 %v227, %v243
      %v299 = vmul.f32 %v228, %v243
      %v300 = vmul.f32 %v229, %v243
      %v301 = vmul.f32 %v230, %v243
      %v302 = vmul.f32 %v231, %v243
      %v303 = vmul.f32 %v232, %v243
      %v304 = vmul.f32 %v233, %v243
      %v305 = vmul.f32 %v234, %v243
      %v306 = vmul.f32 %v235, %v243
      %v307 = vmul.f32 %v236, %v243
      %v308 = vmul.f32 %v237, %v243
      %v309 = vld [vmem:[%s2] sm:$0x1]
      %v311 = vlaneseq
      %v312 = vshrl.u32 %v311, 7
      %v313 = vsub.s32 0, %v312
      %v314 = vrot.slane %v309, %v313
      %v316 = vadd.f32 %v245, %v314
      %v317 = vadd.f32 %v246, %v314
      %v318 = vadd.f32 %v247, %v314
      %v319 = vadd.f32 %v248, %v314
      %v320 = vadd.f32 %v249, %v314
      %v321 = vadd.f32 %v250, %v314
      %v322 = vadd.f32 %v251, %v314
      %v323 = vadd.f32 %v252, %v314
      %v324 = vadd.f32 %v253, %v314
      %v325 = vadd.f32 %v254, %v314
      %v326 = vadd.f32 %v255, %v314
      %v327 = vadd.f32 %v256, %v314
      %v328 = vadd.f32 %v257, %v314
      %v329 = vadd.f32 %v258, %v314
      %v330 = vadd.f32 %v259, %v314
      %v331 = vadd.f32 %v260, %v314
      %v332 = vadd.f32 %v261, %v314
      %v333 = vadd.f32 %v262, %v314
      %v334 = vadd.f32 %v263, %v314
      %v335 = vadd.f32 %v264, %v314
      %v336 = vadd.f32 %v265, %v314
      %v337 = vadd.f32 %v266, %v314
      %v338 = vadd.f32 %v267, %v314
      %v339 = vadd.f32 %v268, %v314
      %v340 = vadd.f32 %v269, %v314
      %v341 = vadd.f32 %v270, %v314
      %v342 = vadd.f32 %v271, %v314
      %v343 = vadd.f32 %v272, %v314
      %v344 = vadd.f32 %v273, %v314
      %v345 = vadd.f32 %v274, %v314
      %v346 = vadd.f32 %v275, %v314
      %v347 = vadd.f32 %v276, %v314
      %v348 = vadd.f32 %v277, %v314
      %v349 = vadd.f32 %v278, %v314
      %v350 = vadd.f32 %v279, %v314
      %v351 = vadd.f32 %v280, %v314
      %v352 = vadd.f32 %v281, %v314
      %v353 = vadd.f32 %v282, %v314
      %v354 = vadd.f32 %v283, %v314
      %v355 = vadd.f32 %v284, %v314
      %v356 = vadd.f32 %v285, %v314
      %v357 = vadd.f32 %v286, %v314
      %v358 = vadd.f32 %v287, %v314
      %v359 = vadd.f32 %v288, %v314
      %v360 = vadd.f32 %v289, %v314
      %v361 = vadd.f32 %v290, %v314
      %v362 = vadd.f32 %v291, %v314
      %v363 = vadd.f32 %v292, %v314
      %v364 = vadd.f32 %v293, %v314
      %v365 = vadd.f32 %v294, %v314
      %v366 = vadd.f32 %v295, %v314
      %v367 = vadd.f32 %v296, %v314
      %v368 = vadd.f32 %v297, %v314
      %v369 = vadd.f32 %v298, %v314
      %v370 = vadd.f32 %v299, %v314
      %v371 = vadd.f32 %v300, %v314
      %v372 = vadd.f32 %v301, %v314
      %v373 = vadd.f32 %v302, %v314
      %v374 = vadd.f32 %v303, %v314
      %v375 = vadd.f32 %v304, %v314
      %v376 = vadd.f32 %v305, %v314
      %v377 = vadd.f32 %v306, %v314
      %v378 = vadd.f32 %v307, %v314
      %v379 = vadd.f32 %v308, %v314
      %v380 = vmax.f32 %v316, 0.0
      %v381 = vmax.f32 %v317, 0.0
      %v382 = vmax.f32 %v318, 0.0
      %v383 = vmax.f32 %v319, 0.0
      %v384 = vmax.f32 %v320, 0.0
      %v385 = vmax.f32 %v321, 0.0
      %v386 = vmax.f32 %v322, 0.0
      %v387 = vmax.f32 %v323, 0.0
      %v388 = vmax.f32 %v324, 0.0
      %v389 = vmax.f32 %v325, 0.0
      %v390 = vmax.f32 %v326, 0.0
      %v391 = vmax.f32 %v327, 0.0
      %v392 = vmax.f32 %v328, 0.0
      %v393 = vmax.f32 %v329, 0.0
      %v394 = vmax.f32 %v330, 0.0
      %v395 = vmax.f32 %v331, 0.0
      %v396 = vmax.f32 %v332, 0.0
      %v397 = vmax.f32 %v333, 0.0
      %v398 = vmax.f32 %v334, 0.0
      %v399 = vmax.f32 %v335, 0.0
      %v400 = vmax.f32 %v336, 0.0
      %v401 = vmax.f32 %v337, 0.0
      %v402 = vmax.f32 %v338, 0.0
      %v403 = vmax.f32 %v339, 0.0
      %v404 = vmax.f32 %v340, 0.0
      %v405 = vmax.f32 %v341, 0.0
      %v406 = vmax.f32 %v342, 0.0
      %v407 = vmax.f32 %v343, 0.0
      %v408 = vmax.f32 %v344, 0.0
      %v409 = vmax.f32 %v345, 0.0
      %v410 = vmax.f32 %v346, 0.0
      %v411 = vmax.f32 %v347, 0.0
      %v412 = vmax.f32 %v348, 0.0
      %v413 = vmax.f32 %v349, 0.0
      %v414 = vmax.f32 %v350, 0.0
      %v415 = vmax.f32 %v351, 0.0
      %v416 = vmax.f32 %v352, 0.0
      %v417 = vmax.f32 %v353, 0.0
      %v418 = vmax.f32 %v354, 0.0
      %v419 = vmax.f32 %v355, 0.0
      %v420 = vmax.f32 %v356, 0.0
      %v421 = vmax.f32 %v357, 0.0
      %v422 = vmax.f32 %v358, 0.0
      %v423 = vmax.f32 %v359, 0.0
      %v424 = vmax.f32 %v360, 0.0
      %v425 = vmax.f32 %v361, 0.0
      %v426 = vmax.f32 %v362, 0.0
      %v427 = vmax.f32 %v363, 0.0
      %v428 = vmax.f32 %v364, 0.0
      %v429 = vmax.f32 %v365, 0.0
      %v430 = vmax.f32 %v366, 0.0
      %v431 = vmax.f32 %v367, 0.0
      %v432 = vmax.f32 %v368, 0.0
      %v433 = vmax.f32 %v369, 0.0
      %v434 = vmax.f32 %v370, 0.0
      %v435 = vmax.f32 %v371, 0.0
      %v436 = vmax.f32 %v372, 0.0
      %v437 = vmax.f32 %v373, 0.0
      %v438 = vmax.f32 %v374, 0.0
      %v439 = vmax.f32 %v375, 0.0
      %v440 = vmax.f32 %v376, 0.0
      %v441 = vmax.f32 %v377, 0.0
      %v442 = vmax.f32 %v378, 0.0
      %v443 = vmax.f32 %v379, 0.0
      %444 = vst [vmem:[%s172] sm:$0xff] %v380
      %445 = vst [vmem:[%s172 + $0x8] sm:$0xff] %v381
      %446 = vst [vmem:[%s172 + $0x10] sm:$0xff] %v382
      %447 = vst [vmem:[%s172 + $0x18] sm:$0xff] %v383
      %448 = vst [vmem:[%s172 + $0x20] sm:$0xff] %v384
      %449 = vst [vmem:[%s172 + $0x28] sm:$0xff] %v385
      %450 = vst [vmem:[%s172 + $0x30] sm:$0xff] %v386
      %451 = vst [vmem:[%s172 + $0x38] sm:$0xff] %v387
      %452 = vst [vmem:[%s172 + $0x40] sm:$0xff] %v388
      %453 = vst [vmem:[%s172 + $0x48] sm:$0xff] %v389
      %454 = vst [vmem:[%s172 + $0x50] sm:$0xff] %v390
      %455 = vst [vmem:[%s172 + $0x58] sm:$0xff] %v391
      %456 = vst [vmem:[%s172 + $0x60] sm:$0xff] %v392
      %457 = vst [vmem:[%s172 + $0x68] sm:$0xff] %v393
      %458 = vst [vmem:[%s172 + $0x70] sm:$0xff] %v394
      %459 = vst [vmem:[%s172 + $0x78] sm:$0xff] %v395
      %460 = vst [vmem:[%s172 + $0x80] sm:$0xff] %v396
      %461 = vst [vmem:[%s172 + $0x88] sm:$0xff] %v397
      %462 = vst [vmem:[%s172 + $0x90] sm:$0xff] %v398
      %463 = vst [vmem:[%s172 + $0x98] sm:$0xff] %v399
      %464 = vst [vmem:[%s172 + $0xa0] sm:$0xff] %v400
      %465 = vst [vmem:[%s172 + $0xa8] sm:$0xff] %v401
      %466 = vst [vmem:[%s172 + $0xb0] sm:$0xff] %v402
      %467 = vst [vmem:[%s172 + $0xb8] sm:$0xff] %v403
      %468 = vst [vmem:[%s172 + $0xc0] sm:$0xff] %v404
      %469 = vst [vmem:[%s172 + $0xc8] sm:$0xff] %v405
      %470 = vst [vmem:[%s172 + $0xd0] sm:$0xff] %v406
      %471 = vst [vmem:[%s172 + $0xd8] sm:$0xff] %v407
      %472 = vst [vmem:[%s172 + $0xe0] sm:$0xff] %v408
      %473 = vst [vmem:[%s172 + $0xe8] sm:$0xff] %v409
      %474 = vst [vmem:[%s172 + $0xf0] sm:$0xff] %v410
      %475 = vst [vmem:[%s172 + $0xf8] sm:$0xff] %v411
      %476 = vst [vmem:[%s172 + $0x100] sm:$0xff] %v412
      %477 = vst [vmem:[%s172 + $0x108] sm:$0xff] %v413
      %478 = vst [vmem:[%s172 + $0x110] sm:$0xff] %v414
      %479 = vst [vmem:[%s172 + $0x118] sm:$0xff] %v415
      %480 = vst [vmem:[%s172 + $0x120] sm:$0xff] %v416
      %481 = vst [vmem:[%s172 + $0x128] sm:$0xff] %v417
      %482 = vst [vmem:[%s172 + $0x130] sm:$0xff] %v418
      %483 = vst [vmem:[%s172 + $0x138] sm:$0xff] %v419
      %484 = vst [vmem:[%s172 + $0x140] sm:$0xff] %v420
      %485 = vst [vmem:[%s172 + $0x148] sm:$0xff] %v421
      %486 = vst [vmem:[%s172 + $0x150] sm:$0xff] %v422
      %487 = vst [vmem:[%s172 + $0x158] sm:$0xff] %v423
      %488 = vst [vmem:[%s172 + $0x160] sm:$0xff] %v424
      %489 = vst [vmem:[%s172 + $0x168] sm:$0xff] %v425
      %490 = vst [vmem:[%s172 + $0x170] sm:$0xff] %v426
      %491 = vst [vmem:[%s172 + $0x178] sm:$0xff] %v427
      %492 = vst [vmem:[%s172 + $0x180] sm:$0xff] %v428
      %493 = vst [vmem:[%s172 + $0x188] sm:$0xff] %v429
      %494 = vst [vmem:[%s172 + $0x190] sm:$0xff] %v430
      %495 = vst [vmem:[%s172 + $0x198] sm:$0xff] %v431
      %496 = vst [vmem:[%s172 + $0x1a0] sm:$0xff] %v432
      %497 = vst [vmem:[%s172 + $0x1a8] sm:$0xff] %v433
      %498 = vst [vmem:[%s172 + $0x1b0] sm:$0xff] %v434
      %499 = vst [vmem:[%s172 + $0x1b8] sm:$0xff] %v435
      %500 = vst [vmem:[%s172 + $0x1c0] sm:$0xff] %v436
      %501 = vst [vmem:[%s172 + $0x1c8] sm:$0xff] %v437
      %502 = vst [vmem:[%s172 + $0x1d0] sm:$0xff] %v438
      %503 = vst [vmem:[%s172 + $0x1d8] sm:$0xff] %v439
      %504 = vst [vmem:[%s172 + $0x1e0] sm:$0xff] %v440
      %505 = vst [vmem:[%s172 + $0x1e8] sm:$0xff] %v441
      %506 = vst [vmem:[%s172 + $0x1f0] sm:$0xff] %v442
      %507 = vst [vmem:[%s172 + $0x1f8] sm:$0xff] %v443
      %s508 = smul.u32 64, %s14
      %p509 = scmp.lt.s32.totalorder %s508, 127
      %s510 = scalar_select %p509, %s508, 127
      %s511 = smul.addr %s510, 8
      %s512 = scalar_lea.vmem %s3, %s511
      // Predicated region
      $region33: #{conv_block_forward.3} parent=31 // pred_check
        %p513 = pneg %p100
      $region34: #{conv_block_forward.3} parent=31 // pred_check_branch
        %515 = sbr.rel (%p513) target = $region36
      $region35: #{conv_block_forward.3} parent=31 // pred_region
        %s516 = smul.u32 64, %s14
      $region36: #{conv_block_forward.3} parent=31 // pred_fallthru
        _
    $region32: #{conv_block_forward.3} parent=5 // pred_fallthru
      _
    %p517 = scmp.le.s32.totalorder 2, %s9
    // Predicated region
    $region37: #{conv_block_forward.3} parent=5 // pred_check
      %p518 = pneg %p517
    $region38: #{conv_block_forward.3} parent=5 // pred_check_branch
      %520 = sbr.rel (%p518) target = $region40
    $region39: #{conv_block_forward.3} parent=5 // pred_region
      %s521 = ssub.s32 %s9, 2
      // Predicated region
      $region41: #{conv_block_forward.3} parent=39 // pred_check
        %p522 = pneg %p106
      $region42: #{conv_block_forward.3} parent=39 // pred_check_branch
        %524 = sbr.rel (%p522) target = $region44
      $region43: #{conv_block_forward.3} parent=39 // pred_region
        %s525 = smul.u32 64, %s15
        %p526 = scmp.lt.s32.totalorder %s525, 127
        %s527 = scalar_select %p526, %s525, 127
        %s528 = smul.addr %s527, 8
        %s529 = scalar_lea.vmem %s3, %s528
      $region44: #{conv_block_forward.3} parent=39 // pred_fallthru
        _
    $region40: #{conv_block_forward.3} parent=5 // pred_fallthru
      _
  $region6: #{conv_block_forward.3} parent=0 // loop_footer
    %s13 = sadd.s32 1, %s9
  $region7: #{conv_block_forward.3} parent=0 // loop_footer_branch
    %8 = sbr.rel target = $region3
  $region8: #{conv_block_forward.3} parent=0 // loop_exit
    _

// kernel: conv_block_forward.2
$region0: #{conv_block_forward.2}
  #allocation0 [shape = 'u32[]', space=smem, size = 0x4, offset = 0x4, fixed_abs, tag = 'smem constant byte address 0x4 - core index']
  #allocation1 [shape = 'u32[144,128]{1,0:T(1,128)}', space=vmem, size = 0x12000, scoped, tag = 'internal scratch']
  %s0 = inlined_call_operand.vmem [shape: bf16[1024,128], index: 0, kind: input, shape index: {}]
  %s1 = inlined_call_operand.vmem [shape: bf16[128,128], index: 1, kind: input, shape index: {}]
  %s2 = inlined_call_operand.vmem [shape: f32[1024,128], index: 2, kind: output, shape index: {0}]
  %s3 = inlined_call_operand.vmem [shape: f32[16,128], index: 3, kind: output, shape index: {1}]
  %s4 = inlined_call_operand.vmem [shape: f32[16,128], index: 4, kind: output, shape index: {2}]
  %5 = xla_tuple %s2, %s3, %s4
  %s6 = sld [smem:[#allocation0]]
  $region57: #{conv_block_forward.2} parent=0
    _
  %s8 = ssub.s32 1, %s6
  %s9 = scalar_select 0, %s8, %s6
  loop: start=0, step=1, limit=4
  $region2: #{conv_block_forward.2} parent=0 // loop_pre_header
    _
  $region3: #{conv_block_forward.2} parent=0 // loop_header
    %s11 = sphi 0, %s15
    %p12 = scmp.ge.s32.totalorder %s11, 4
    %s21 = sphi 0, %s23
    %s24 = sphi 0, %s21
    %s25 = sphi 0, %s24
    %s41 = sphi 0, %s25
    %s45 = sphi 0, %s45
    %s47 = sphi 0, %s45
    %s48 = sphi 0, %s47
    %s62 = sphi 0, %s48
    %s68 = sphi 0, %s70
    %s71 = sphi 0, %s68
    %s72 = sphi 0, %s71
    %s88 = sphi 0, %s72
    %s94 = sphi 0, %s96
    %s97 = sphi 0, %s94
    %s98 = sphi 0, %s97
    %s114 = sphi 0, %s98
    %s120 = sphi 0, %s122
    %s123 = sphi 0, %s120
    %s124 = sphi 0, %s123
    %s140 = sphi 0, %s124
  $region4: #{conv_block_forward.2} parent=0 // loop_header_branch
    %14 = sbr.rel (%p12) target = $region8
  $region5: #{conv_block_forward.2} parent=0 // loop_body
    %s16 = ssub.s32 %s11, 1
    %s17 = ssub.s32 %s11, 2
    %s18 = sadd.s32 %s11, 1
    %s19 = ssub.s32 %s11, %s18
    %p20 = scmp.eq.s32.totalorder %s19, 0
    %s22 = sadd.s32 %s21, 1
    %s23 = scalar_select %p20, %s21, %s22
    %p26 = pneg %p20
    %p27 = scmp.eq.s32.totalorder %s11, 1
    %p28 = por %p26, %p27
    %p29 = scmp.ne.s32.totalorder %s21, %s24
    %p30 = scmp.eq.s32.totalorder %s11, 0
    %p31 = por %p29, %p30
    %p32 = scmp.ne.s32.totalorder %s21, %s24
    %p33 = scmp.eq.s32.totalorder %s16, 1
    %p34 = por %p32, %p33
    %p35 = scmp.ne.s32.totalorder %s24, %s25
    %p36 = scmp.eq.s32.totalorder %s16, 0
    %p37 = por %p35, %p36
    %p38 = scmp.ne.s32.totalorder %s24, %s25
    %p39 = scmp.eq.s32.totalorder %s17, 1
    %p40 = por %p38, %p39
    %p42 = scmp.ne.s32.totalorder %s25, %s41
    %p43 = scmp.eq.s32.totalorder %s17, 0
    %p44 = por %p42, %p43
    %s46 = sadd.s32 %s45, 1
    %p49 = scmp.eq.s32.totalorder %s11, 1
    %p50 = scmp.ne.s32.totalorder %s45, %s47
    %p51 = scmp.eq.s32.totalorder %s11, 0
    %p52 = por %p50, %p51
    %p53 = scmp.ne.s32.totalorder %s45, %s47
    %p54 = scmp.eq.s32.totalorder %s16, 1
    %p55 = por %p53, %p54
    %p56 = scmp.ne.s32.totalorder %s47, %s48
    %p57 = scmp.eq.s32.totalorder %s16, 0
    %p58 = por %p56, %p57
    %p59 = scmp.ne.s32.totalorder %s47, %s48
    %p60 = scmp.eq.s32.totalorder %s17, 1
    %p61 = por %p59, %p60
    %p63 = scmp.ne.s32.totalorder %s48, %s62
    %p64 = scmp.eq.s32.totalorder %s17, 0
    %p65 = por %p63, %p64
    %s66 = ssub.s32 %s11, %s18
    %p67 = scmp.eq.s32.totalorder %s66, 0
    %s69 = sadd.s32 %s68, 1
    %s70 = scalar_select %p67, %s68, %s69
    %p73 = pneg %p67
    %p74 = scmp.eq.s32.totalorder %s11, 1
    %p75 = por %p73, %p74
    %p76 = scmp.ne.s32.totalorder %s68, %s71
    %p77 = scmp.eq.s32.totalorder %s11, 0
    %p78 = por %p76, %p77
    %p79 = scmp.ne.s32.totalorder %s68, %s71
    %p80 = scmp.eq.s32.totalorder %s16, 1
    %p81 = por %p79, %p80
    %p82 = scmp.ne.s32.totalorder %s71, %s72
    %p83 = scmp.eq.s32.totalorder %s16, 0
    %p84 = por %p82, %p83
    %p85 = scmp.ne.s32.totalorder %s71, %s72
    %p86 = scmp.eq.s32.totalorder %s17, 1
    %p87 = por %p85, %p86
    %p89 = scmp.ne.s32.totalorder %s72, %s88
    %p90 = scmp.eq.s32.totalorder %s17, 0
    %p91 = por %p89, %p90
    %s92 = ssub.s32 %s11, %s18
    %p93 = scmp.eq.s32.totalorder %s92, 0
    %s95 = sadd.s32 %s94, 1
    %s96 = scalar_select %p93, %s94, %s95
    %p99 = pneg %p93
    %p100 = scmp.eq.s32.totalorder %s11, 1
    %p101 = por %p99, %p100
    %p102 = scmp.ne.s32.totalorder %s94, %s97
    %p103 = scmp.eq.s32.totalorder %s11, 0
    %p104 = por %p102, %p103
    %p105 = scmp.ne.s32.totalorder %s94, %s97
    %p106 = scmp.eq.s32.totalorder %s16, 1
    %p107 = por %p105, %p106
    %p108 = scmp.ne.s32.totalorder %s97, %s98
    %p109 = scmp.eq.s32.totalorder %s16, 0
    %p110 = por %p108, %p109
    %p111 = scmp.ne.s32.totalorder %s97, %s98
    %p112 = scmp.eq.s32.totalorder %s17, 1
    %p113 = por %p111, %p112
    %p115 = scmp.ne.s32.totalorder %s98, %s114
    %p116 = scmp.eq.s32.totalorder %s17, 0
    %p117 = por %p115, %p116
    %s118 = ssub.s32 %s11, %s18
    %p119 = scmp.eq.s32.totalorder %s118, 0
    %s121 = sadd.s32 %s120, 1
    %s122 = scalar_select %p119, %s120, %s121
    %p125 = pneg %p119
    %p126 = scmp.eq.s32.totalorder %s11, 1
    %p127 = por %p125, %p126
    %p128 = scmp.ne.s32.totalorder %s120, %s123
    %p129 = scmp.eq.s32.totalorder %s11, 0
    %p130 = por %p128, %p129
    %p131 = scmp.ne.s32.totalorder %s120, %s123
    %p132 = scmp.eq.s32.totalorder %s16, 1
    %p133 = por %p131, %p132
    %p134 = scmp.ne.s32.totalorder %s123, %s124
    %p135 = scmp.eq.s32.totalorder %s16, 0
    %p136 = por %p134, %p135
    %p137 = scmp.ne.s32.totalorder %s123, %s124
    %p138 = scmp.eq.s32.totalorder %s17, 1
    %p139 = por %p137, %p138
    %p141 = scmp.ne.s32.totalorder %s124, %s140
    %p142 = scmp.eq.s32.totalorder %s17, 0
    %p143 = por %p141, %p142
    %p144 = scmp.le.s32.totalorder 1, %s11
    %p145 = scmp.lt.s32.totalorder %s11, 3
    %p146 = pnand %p144, %p145
    %p147 = pneg %p146
    // Predicated region
    $region9: #{conv_block_forward.2} parent=5 // pred_check
      _
    $region10: #{conv_block_forward.2} parent=5 // pred_check_branch
      %149 = sbr.rel (%p146) target = $region12
    $region11: #{conv_block_forward.2} parent=5 // pred_region
      %s150 = ssub.s32 %s11, 1
      // Predicated region
      $region13: #{conv_block_forward.2} parent=11 // pred_check
        %p151 = pneg %p58
      $region14: #{conv_block_forward.2} parent=11 // pred_check_branch
        %153 = sbr.rel (%p151) target = $region16
      $region15: #{conv_block_forward.2} parent=11 // pred_region
        _
      $region16: #{conv_block_forward.2} parent=11 // pred_fallthru
        _
    $region12: #{conv_block_forward.2} parent=5 // pred_fallthru
      _
    %p154 = scmp.lt.s32.totalorder %s11, 2
    // Predicated region
    $region17: #{conv_block_forward.2} parent=5 // pred_check
      %p155 = pneg %p154
    $region18: #{conv_block_forward.2} parent=5 // pred_check_branch
      %157 = sbr.rel (%p155) target = $region20
    $region19: #{conv_block_forward.2} parent=5 // pred_region
      // Predicated region
      $region21: #{conv_block_forward.2} parent=19 // pred_check
        %p158 = pneg %p31
      $region22: #{conv_block_forward.2} parent=19 // pred_check_branch
        %160 = sbr.rel (%p158) target = $region24
      $region23: #{conv_block_forward.2} parent=19 // pred_region
        %s161 = smul.u32 64, %s11
        %p162 = scmp.lt.s32.totalorder %s161, 127
        %s163 = scalar_select %p162, %s161, 127
        %s164 = smul.addr %s163, 4
        %s165 = scalar_lea.vmem %s0, %s164
        %s166 = smul.u32 64, %s11
      $region24: #{conv_block_forward.2} parent=19 // pred_fallthru
        _
    $region20: #{conv_block_forward.2} parent=5 // pred_fallthru
      _
    %p167 = scmp.le.s32.totalorder 1, %s11
    %p168 = scmp.lt.s32.totalorder %s11, 3
    %p169 = pnand %p167, %p168
    %p170 = pneg %p169
    // Predicated region
    $region25: #{conv_block_forward.2} parent=5 // pred_check
      _
    $region26: #{conv_block_forward.2} parent=5 // pred_check_branch
      %172 = sbr.rel (%p169) target = $region28
    $region27: #{conv_block_forward.2} parent=5 // pred_region
      %s173 = ssub.s32 %s11, 1
      %s174 = smul.u32 64, %s16
      %p175 = scmp.lt.s32.totalorder %s174, 127
      %s176 = scalar_select %p175, %s174, 127
      %s177 = smul.addr %s176, 4
      %s178 = scalar_lea.vmem %s0, %s177
      %p179 = pneg %p37
      %p180 = pneg %p34
      %p181 = pneg %p58
      %p182 = pneg %p55
      %p183 = pneg %p84
      %p184 = pneg %p81
      %s185 = smul.u32 64, %s16
      %p186 = scmp.lt.s32.totalorder %s185, 127
      %s187 = scalar_select %p186, %s185, 127
      %s188 = smul.addr %s187, 8
      %s189 = scalar_lea.vmem %s2, %s188
      %p190 = pneg %p110
      %p191 = pneg %p107
      %p192 = scmp.lt.s32.totalorder %s16, 1
      %s193 = scalar_select %p192, %s16, 1
      %s194 = smul.addr %s193, 8
      %s195 = scalar_lea.vmem %s3, %s194
      %p196 = pneg %p136
      %p197 = pneg %p133
      %p198 = scmp.lt.s32.totalorder %s16, 1
      %s199 = scalar_select %p198, %s16, 1
      %s200 = smul.addr %s199, 8
      %s201 = scalar_lea.vmem %s4, %s200
      %s202 = smul.u32 64, %s16
      %p203 = scmp.lt.s32.totalorder %s202, 127
      %s204 = scalar_select %p203, %s202, 127
      %s205 = smul.addr %s204, 4
      %s206 = scalar_lea.vmem %s0, %s205
      %s207 = smul.u32 64, %s16
      %s208 = smul.u32 64, %s16
      %p209 = scmp.lt.s32.totalorder %s208, 127
      %s210 = scalar_select %p209, %s208, 127
      %s211 = smul.addr %s210, 8
      %s212 = scalar_lea.vmem %s2, %s211
      %s213 = smul.u32 64, %s16
      %p214 = scmp.lt.s32.totalorder %s16, 1
      %s215 = scalar_select %p214, %s16, 1
      %s216 = smul.addr %s215, 8
      %s217 = scalar_lea.vmem %s3, %s216
      %p218 = scmp.lt.s32.totalorder %s16, 1
      %s219 = scalar_select %p218, %s16, 1
      %s220 = smul.addr %s219, 8
      %s221 = scalar_lea.vmem %s4, %s220
      %v223 = vld [vmem:[%s206] sm:$0xf]
      %v224 = vld [vmem:[%s206 + $0x4] sm:$0xf]
      %v225 = vld [vmem:[%s206 + $0x8] sm:$0xf]
      %v226 = vld [vmem:[%s206 + $0xc] sm:$0xf]
      %v227 = vld [vmem:[%s206 + $0x10] sm:$0xf]
      %v228 = vld [vmem:[%s206 + $0x14] sm:$0xf]
      %v229 = vld [vmem:[%s206 + $0x18] sm:$0xf]
      %v230 = vld [vmem:[%s206 + $0x1c] sm:$0xf]
      %v231 = vld [vmem:[%s206 + $0x20] sm:$0xf]
      %v232 = vld [vmem:[%s206 + $0x24] sm:$0xf]
      %v233 = vld [vmem:[%s206 + $0x28] sm:$0xf]
      %v234 = vld [vmem:[%s206 + $0x2c] sm:$0xf]
      %v235 = vld [vmem:[%s206 + $0x30] sm:$0xf]
      %v236 = vld [vmem:[%s206 + $0x34] sm:$0xf]
      %v237 = vld [vmem:[%s206 + $0x38] sm:$0xf]
      %v238 = vld [vmem:[%s206 + $0x3c] sm:$0xf]
      %v239 = vld [vmem:[%s206 + $0x40] sm:$0xf]
      %v240 = vld [vmem:[%s206 + $0x44] sm:$0xf]
      %v241 = vld [vmem:[%s206 + $0x48] sm:$0xf]
      %v242 = vld [vmem:[%s206 + $0x4c] sm:$0xf]
      %v243 = vld [vmem:[%s206 + $0x50] sm:$0xf]
      %v244 = vld [vmem:[%s206 + $0x54] sm:$0xf]
      %v245 = vld [vmem:[%s206 + $0x58] sm:$0xf]
      %v246 = vld [vmem:[%s206 + $0x5c] sm:$0xf]
      %v247 = vld [vmem:[%s206 + $0x60] sm:$0xf]
      %v248 = vld [vmem:[%s206 + $0x64] sm:$0xf]
      %v249 = vld [vmem:[%s206 + $0x68] sm:$0xf]
      %v250 = vld [vmem:[%s206 + $0x6c] sm:$0xf]
      %v251 = vld [vmem:[%s206 + $0x70] sm:$0xf]
      %v252 = vld [vmem:[%s206 + $0x74] sm:$0xf]
      %v253 = vld [vmem:[%s206 + $0x78] sm:$0xf]
      %v254 = vld [vmem:[%s206 + $0x7c] sm:$0xf]
      %v255 = vld [vmem:[%s206 + $0x80] sm:$0xf]
      %v256 = vld [vmem:[%s206 + $0x84] sm:$0xf]
      %v257 = vld [vmem:[%s206 + $0x88] sm:$0xf]
      %v258 = vld [vmem:[%s206 + $0x8c] sm:$0xf]
      %v259 = vld [vmem:[%s206 + $0x90] sm:$0xf]
      %v260 = vld [vmem:[%s206 + $0x94] sm:$0xf]
      %v261 = vld [vmem:[%s206 + $0x98] sm:$0xf]
      %v262 = vld [vmem:[%s206 + $0x9c] sm:$0xf]
      %v263 = vld [vmem:[%s206 + $0xa0] sm:$0xf]
      %v264 = vld [vmem:[%s206 + $0xa4] sm:$0xf]
      %v265 = vld [vmem:[%s206 + $0xa8] sm:$0xf]
      %v266 = vld [vmem:[%s206 + $0xac] sm:$0xf]
      %v267 = vld [vmem:[%s206 + $0xb0] sm:$0xf]
      %v268 = vld [vmem:[%s206 + $0xb4] sm:$0xf]
      %v269 = vld [vmem:[%s206 + $0xb8] sm:$0xf]
      %v270 = vld [vmem:[%s206 + $0xbc] sm:$0xf]
      %v271 = vld [vmem:[%s206 + $0xc0] sm:$0xf]
      %v272 = vld [vmem:[%s206 + $0xc4] sm:$0xf]
      %v273 = vld [vmem:[%s206 + $0xc8] sm:$0xf]
      %v274 = vld [vmem:[%s206 + $0xcc] sm:$0xf]
      %v275 = vld [vmem:[%s206 + $0xd0] sm:$0xf]
      %v276 = vld [vmem:[%s206 + $0xd4] sm:$0xf]
      %v277 = vld [vmem:[%s206 + $0xd8] sm:$0xf]
      %v278 = vld [vmem:[%s206 + $0xdc] sm:$0xf]
      %v279 = vld [vmem:[%s206 + $0xe0] sm:$0xf]
      %v280 = vld [vmem:[%s206 + $0xe4] sm:$0xf]
      %v281 = vld [vmem:[%s206 + $0xe8] sm:$0xf]
      %v282 = vld [vmem:[%s206 + $0xec] sm:$0xf]
      %v283 = vld [vmem:[%s206 + $0xf0] sm:$0xf]
      %v284 = vld [vmem:[%s206 + $0xf4] sm:$0xf]
      %v285 = vld [vmem:[%s206 + $0xf8] sm:$0xf]
      %v286 = vld [vmem:[%s206 + $0xfc] sm:$0xf]
      %v287 = vld [vmem:[%s1] sm:$0xf]
      %v288 = vld [vmem:[%s1 + $0x4] sm:$0xf]
      %v289 = vld [vmem:[%s1 + $0x8] sm:$0xf]
      %v290 = vld [vmem:[%s1 + $0xc] sm:$0xf]
      %v291 = vld [vmem:[%s1 + $0x10] sm:$0xf]
      %v292 = vld [vmem:[%s1 + $0x14] sm:$0xf]
      %v293 = vld [vmem:[%s1 + $0x18] sm:$0xf]
      %v294 = vld [vmem:[%s1 + $0x1c] sm:$0xf]
      %v295 = vld [vmem:[%s1 + $0x20] sm:$0xf]
      %v296 = vld [vmem:[%s1 + $0x24] sm:$0xf]
      %v297 = vld [vmem:[%s1 + $0x28] sm:$0xf]
      %v298 = vld [vmem:[%s1 + $0x2c] sm:$0xf]
      %v299 = vld [vmem:[%s1 + $0x30] sm:$0xf]
      %v300 = vld [vmem:[%s1 + $0x34] sm:$0xf]
      %v301 = vld [vmem:[%s1 + $0x38] sm:$0xf]
      %v302 = vld [vmem:[%s1 + $0x3c] sm:$0xf]
      %v367 = vunpack.c.l.b16 %v223
      %v368 = vunpack.c.l.b16 %v224
      %v369 = vunpack.c.l.b16 %v225
      %v370 = vunpack.c.l.b16 %v226
      %v371 = vunpack.c.l.b16 %v227
      %v372 = vunpack.c.l.b16 %v228
      %v373 = vunpack.c.l.b16 %v229
      %v374 = vunpack.c.l.b16 %v230
      %v375 = vunpack.c.l.b16 %v231
      %v376 = vunpack.c.l.b16 %v232
      %v377 = vunpack.c.l.b16 %v233
      %v378 = vunpack.c.l.b16 %v234
      %v379 = vunpack.c.l.b16 %v235
      %v380 = vunpack.c.l.b16 %v236
      %v381 = vunpack.c.l.b16 %v237
      %v382 = vunpack.c.l.b16 %v238
      %v383 = vunpack.c.l.b16 %v239
      %v384 = vunpack.c.l.b16 %v240
      %v385 = vunpack.c.l.b16 %v241
      %v386 = vunpack.c.l.b16 %v242
      %v387 = vunpack.c.l.b16 %v243
      %v388 = vunpack.c.l.b16 %v244
      %v389 = vunpack.c.l.b16 %v245
      %v390 = vunpack.c.l.b16 %v246
      %v391 = vunpack.c.l.b16 %v247
      %v392 = vunpack.c.l.b16 %v248
      %v393 = vunpack.c.l.b16 %v249
      %v394 = vunpack.c.l.b16 %v250
      %v395 = vunpack.c.l.b16 %v251
      %v396 = vunpack.c.l.b16 %v252
      %v397 = vunpack.c.l.b16 %v253
      %v398 = vunpack.c.l.b16 %v254
      %v399 = vunpack.c.l.b16 %v255
      %v400 = vunpack.c.l.b16 %v256
      %v401 = vunpack.c.l.b16 %v257
      %v402 = vunpack.c.l.b16 %v258
      %v403 = vunpack.c.l.b16 %v259
      %v404 = vunpack.c.l.b16 %v260
      %v405 = vunpack.c.l.b16 %v261
      %v406 = vunpack.c.l.b16 %v262
      %v407 = vunpack.c.l.b16 %v263
      %v408 = vunpack.c.l.b16 %v264
      %v409 = vunpack.c.l.b16 %v265
      %v410 = vunpack.c.l.b16 %v266
      %v411 = vunpack.c.l.b16 %v267
      %v412 = vunpack.c.l.b16 %v268
      %v413 = vunpack.c.l.b16 %v269
      %v414 = vunpack.c.l.b16 %v270
      %v415 = vunpack.c.l.b16 %v271
      %v416 = vunpack.c.l.b16 %v272
      %v417 = vunpack.c.l.b16 %v273
      %v418 = vunpack.c.l.b16 %v274
      %v419 = vunpack.c.l.b16 %v275
      %v420 = vunpack.c.l.b16 %v276
      %v421 = vunpack.c.l.b16 %v277
      %v422 = vunpack.c.l.b16 %v278
      %v423 = vunpack.c.l.b16 %v279
      %v424 = vunpack.c.l.b16 %v280
      %v425 = vunpack.c.l.b16 %v281
      %v426 = vunpack.c.l.b16 %v282
      %v427 = vunpack.c.l.b16 %v283
      %v428 = vunpack.c.l.b16 %v284
      %v429 = vunpack.c.l.b16 %v285
      %v430 = vunpack.c.l.b16 %v286
      %v431 = vpack.c.b16 %v368, %v367
      %v432 = vpack.c.b16 %v370, %v369
      %v433 = vpack.c.b16 %v372, %v371
      %v434 = vpack.c.b16 %v374, %v373
      %v435 = vpack.c.b16 %v376, %v375
      %v436 = vpack.c.b16 %v378, %v377
      %v437 = vpack.c.b16 %v380, %v379
      %v438 = vpack.c.b16 %v382, %v381
      %v439 = vpack.c.b16 %v384, %v383
      %v440 = vpack.c.b16 %v386, %v385
      %v441 = vpack.c.b16 %v388, %v387
      %v442 = vpack.c.b16 %v390, %v389
      %v443 = vpack.c.b16 %v392, %v391
      %v444 = vpack.c.b16 %v394, %v393
      %v445 = vpack.c.b16 %v396, %v395
      %v446 = vpack.c.b16 %v398, %v397
      %v447 = vpack.c.b16 %v400, %v399
      %v448 = vpack.c.b16 %v402, %v401
      %v449 = vpack.c.b16 %v404, %v403
      %v450 = vpack.c.b16 %v406, %v405
      %v451 = vpack.c.b16 %v408, %v407
      %v452 = vpack.c.b16 %v410, %v409
      %v453 = vpack.c.b16 %v412, %v411
      %v454 = vpack.c.b16 %v414, %v413
      %v455 = vpack.c.b16 %v416, %v415
      %v456 = vpack.c.b16 %v418, %v417
      %v457 = vpack.c.b16 %v420, %v419
      %v458 = vpack.c.b16 %v422, %v421
      %v459 = vpack.c.b16 %v424, %v423
      %v460 = vpack.c.b16 %v426, %v425
      %v461 = vpack.c.b16 %v428, %v427
      %v462 = vpack.c.b16 %v430, %v429
      %v511 = vunpack.c.l.b16 %v287
      %v512 = vunpack.c.l.b16 %v288
      %v513 = vunpack.c.l.b16 %v289
      %v514 = vunpack.c.l.b16 %v290
      %v515 = vunpack.c.l.b16 %v291
      %v516 = vunpack.c.l.b16 %v292
      %v517 = vunpack.c.l.b16 %v293
      %v518 = vunpack.c.l.b16 %v294
      %v519 = vunpack.c.l.b16 %v295
      %v520 = vunpack.c.l.b16 %v296
      %v521 = vunpack.c.l.b16 %v297
      %v522 = vunpack.c.l.b16 %v298
      %v523 = vunpack.c.l.b16 %v299
      %v524 = vunpack.c.l.b16 %v300
      %v525 = vunpack.c.l.b16 %v301
      %v526 = vunpack.c.l.b16 %v302
      %v527 = vpack.c.b16 %v512, %v511
      %v528 = vpack.c.b16 %v514, %v513
      %v529 = vpack.c.b16 %v516, %v515
      %v530 = vpack.c.b16 %v518, %v517
      %v531 = vpack.c.b16 %v520, %v519
      %v532 = vpack.c.b16 %v522, %v521
      %v533 = vpack.c.b16 %v524, %v523
      %v534 = vpack.c.b16 %v526, %v525
      %543 = vmatprep.subr.bf16.mxu0 0
      %544 = vmatpush1.bf16.msra.mxu0 %v534
      %545 = vmatprep.subr.bf16.mxu0 0
      %546 = vmatpush1.bf16.msra.mxu0 %v533
      %547 = vmatprep.subr.bf16.mxu0 0
      %548 = vmatpush1.bf16.msra.mxu0 %v532
      %549 = vmatprep.subr.bf16.mxu0 0
      %550 = vmatpush1.bf16.msra.mxu0 %v531
      %551 = vmatprep.subr.bf16.mxu0 0
      %552 = vmatpush1.bf16.msra.mxu0 %v530
      %553 = vmatprep.subr.bf16.mxu0 0
      %554 = vmatpush1.bf16.msra.mxu0 %v529
      %555 = vmatprep.subr.bf16.mxu0 0
      %556 = vmatpush1.bf16.msra.mxu0 %v528
      %557 = vmatprep.subr.bf16.mxu0 0
      %558 = vmatpush1.bf16.msra.mxu0 %v527
      %559 = vmatprep.subr.bf16.mxu0 0
      %560 = vmatpush2.bf16.msra.mxu0 0
      %561 = vmatprep.subr.bf16.mxu0 0
      %562 = vmatpush2.bf16.msra.mxu0 0
      %563 = vmatprep.subr.bf16.mxu0 0
      %564 = vmatpush2.bf16.msra.mxu0 0
      %565 = vmatprep.subr.bf16.mxu0 0
      %566 = vmatpush2.bf16.msra.mxu0 0
      %567 = vmatprep.subr.bf16.mxu0 0
      %568 = vmatpush2.bf16.msra.mxu0 0
      %569 = vmatprep.subr.bf16.mxu0 0
      %570 = vmatpush2.bf16.msra.mxu0 0
      %571 = vmatprep.subr.bf16.mxu0 0
      %572 = vmatpush2.bf16.msra.mxu0 0
      %573 = vmatprep.subr.bf16.mxu0 0
      %574 = vmatpush2.bf16.msra.mxu0 0
      %575 = vmatprep.mubr.bf16.mxu0 0
      %576 = vmatmul.mubr.bf16.gmra.mxu0 %v431
      %v577 = vpop.f32.mrf.mxu0
      %v578 = vadd.f32 0.0, %v577
      %v579 = vpop.f32.mrf.mxu0
      %v580 = vpop.f32.mrf.mxu0
      %v581 = vadd.f32 0.0, %v580
      %v582 = vpop.f32.mrf.mxu0
      %583 = vmatprep.mubr.bf16.mxu0 0
      %584 = vmatmul.mubr.bf16.gmra.mxu0 %v432
      %v585 = vpop.f32.mrf.mxu0
      %v586 = vadd.f32 0.0, %v585
      %v587 = vpop.f32.mrf.mxu0
      %v588 = vpop.f32.mrf.mxu0
      %v589 = vadd.f32 0.0, %v588
      %v590 = vpop.f32.mrf.mxu0
      %591 = vmatprep.mubr.bf16.mxu0 0
      %592 = vmatmul.mubr.bf16.gmra.mxu0 %v433
      %v593 = vpop.f32.mrf.mxu0
      %v594 = vadd.f32 0.0, %v593
      %v595 = vpop.f32.mrf.mxu0
      %v596 = vpop.f32.mrf.mxu0
      %v597 = vadd.f32 0.0, %v596
      %v598 = vpop.f32.mrf.mxu0
      %599 = vmatprep.mubr.bf16.mxu0 0
      %600 = vmatmul.mubr.bf16.gmra.mxu0 %v434
      %v601 = vpop.f32.mrf.mxu0
      %v602 = vadd.f32 0.0, %v601
      %v603 = vpop.f32.mrf.mxu0
      %v604 = vpop.f32.mrf.mxu0
      %v605 = vadd.f32 0.0, %v604
      %v606 = vpop.f32.mrf.mxu0
      %607 = vmatprep.mubr.bf16.mxu0 0
      %608 = vmatmul.mubr.bf16.gmra.mxu0 %v435
      %v609 = vpop.f32.mrf.mxu0
      %v610 = vadd.f32 0.0, %v609
      %v611 = vpop.f32.mrf.mxu0
      %v612 = vpop.f32.mrf.mxu0
      %v613 = vadd.f32 0.0, %v612
      %v614 = vpop.f32.mrf.mxu0
      %615 = vmatprep.mubr.bf16.mxu0 0
      %616 = vmatmul.mubr.bf16.gmra.mxu0 %v436
      %v617 = vpop.f32.mrf.mxu0
      %v618 = vadd.f32 0.0, %v617
      %v619 = vpop.f32.mrf.mxu0
      %v620 = vpop.f32.mrf.mxu0
      %v621 = vadd.f32 0.0, %v620
      %v622 = vpop.f32.mrf.mxu0
      %623 = vmatprep.mubr.bf16.mxu0 0
      %624 = vmatmul.mubr.bf16.gmra.mxu0 %v437
      %v625 = vpop.f32.mrf.mxu0
      %v626 = vadd.f32 0.0, %v625
      %v627 = vpop.f32.mrf.mxu0
      %v628 = vpop.f32.mrf.mxu0
      %v629 = vadd.f32 0.0, %v628
      %v630 = vpop.f32.mrf.mxu0
      %631 = vmatprep.mubr.bf16.mxu0 0
      %632 = vmatmul.mubr.bf16.gmra.mxu0 %v438
      %v633 = vpop.f32.mrf.mxu0
      %v634 = vadd.f32 0.0, %v633
      %v635 = vpop.f32.mrf.mxu0
      %v636 = vpop.f32.mrf.mxu0
      %v637 = vadd.f32 0.0, %v636
      %v638 = vpop.f32.mrf.mxu0
      %639 = vmatprep.mubr.bf16.mxu0 0
      %640 = vmatmul.mubr.bf16.gmra.mxu0 %v439
      %v641 = vpop.f32.mrf.mxu0
      %v642 = vadd.f32 0.0, %v641
      %v643 = vpop.f32.mrf.mxu0
      %v644 = vpop.f32.mrf.mxu0
      %v645 = vadd.f32 0.0, %v644
      %v646 = vpop.f32.mrf.mxu0
      %647 = vmatprep.mubr.bf16.mxu0 0
      %648 = vmatmul.mubr.bf16.gmra.mxu0 %v440
      %v649 = vpop.f32.mrf.mxu0
      %v650 = vadd.f32 0.0, %v649
      %v651 = vpop.f32.mrf.mxu0
      %v652 = vpop.f32.mrf.mxu0
      %v653 = vadd.f32 0.0, %v652
      %v654 = vpop.f32.mrf.mxu0
      %655 = vmatprep.mubr.bf16.mxu0 0
      %656 = vmatmul.mubr.bf16.gmra.mxu0 %v441
      %v657 = vpop.f32.mrf.mxu0
      %v658 = vadd.f32 0.0, %v657
      %v659 = vpop.f32.mrf.mxu0
      %v660 = vpop.f32.mrf.mxu0
      %v661 = vadd.f32 0.0, %v660
      %v662 = vpop.f32.mrf.mxu0
      %663 = vmatprep.mubr.bf16.mxu0 0
      %664 = vmatmul.mubr.bf16.gmra.mxu0 %v442
      %v665 = vpop.f32.mrf.mxu0
      %v666 = vadd.f32 0.0, %v665
      %v667 = vpop.f32.mrf.mxu0
      %v668 = vpop.f32.mrf.mxu0
      %v669 = vadd.f32 0.0, %v668
      %v670 = vpop.f32.mrf.mxu0
      %671 = vmatprep.mubr.bf16.mxu0 0
      %672 = vmatmul.mubr.bf16.gmra.mxu0 %v443
      %v673 = vpop.f32.mrf.mxu0
      %v674 = vadd.f32 0.0, %v673
      %v675 = vpop.f32.mrf.mxu0
      %v676 = vpop.f32.mrf.mxu0
      %v677 = vadd.f32 0.0, %v676
      %v678 = vpop.f32.mrf.mxu0
      %679 = vmatprep.mubr.bf16.mxu0 0
      %680 = vmatmul.mubr.bf16.gmra.mxu0 %v444
      %v681 = vpop.f32.mrf.mxu0
      %v682 = vadd.f32 0.0, %v681
      %v683 = vpop.f32.mrf.mxu0
      %v684 = vpop.f32.mrf.mxu0
      %v685 = vadd.f32 0.0, %v684
      %v686 = vpop.f32.mrf.mxu0
      %687 = vmatprep.mubr.bf16.mxu0 0
      %688 = vmatmul.mubr.bf16.gmra.mxu0 %v445
      %v689 = vpop.f32.mrf.mxu0
      %v690 = vadd.f32 0.0, %v689
      %v691 = vpop.f32.mrf.mxu0
      %v692 = vpop.f32.mrf.mxu0
      %v693 = vadd.f32 0.0, %v692
      %v694 = vpop.f32.mrf.mxu0
      %695 = vmatprep.mubr.bf16.mxu0 0
      %696 = vmatmul.mubr.bf16.gmra.mxu0 %v446
      %v697 = vpop.f32.mrf.mxu0
      %v698 = vadd.f32 0.0, %v697
      %v699 = vpop.f32.mrf.mxu0
      %v700 = vpop.f32.mrf.mxu0
      %v701 = vadd.f32 0.0, %v700
      %v702 = vpop.f32.mrf.mxu0
      %703 = vmatprep.mubr.bf16.mxu0 0
      %704 = vmatmul.mubr.bf16.gmra.mxu0 %v447
      %v705 = vpop.f32.mrf.mxu0
      %v706 = vadd.f32 0.0, %v705
      %v707 = vpop.f32.mrf.mxu0
      %v708 = vpop.f32.mrf.mxu0
      %v709 = vadd.f32 0.0, %v708
      %v710 = vpop.f32.mrf.mxu0
      %711 = vmatprep.mubr.bf16.mxu0 0
      %712 = vmatmul.mubr.bf16.gmra.mxu0 %v448
      %v713 = vpop.f32.mrf.mxu0
      %v714 = vadd.f32 0.0, %v713
      %v715 = vpop.f32.mrf.mxu0
      %v716 = vpop.f32.mrf.mxu0
      %v717 = vadd.f32 0.0, %v716
      %v718 = vpop.f32.mrf.mxu0
      %719 = vmatprep.mubr.bf16.mxu0 0
      %720 = vmatmul.mubr.bf16.gmra.mxu0 %v449
      %v721 = vpop.f32.mrf.mxu0
      %v722 = vadd.f32 0.0, %v721
      %v723 = vpop.f32.mrf.mxu0
      %v724 = vpop.f32.mrf.mxu0
      %v725 = vadd.f32 0.0, %v724
      %v726 = vpop.f32.mrf.mxu0
      %727 = vmatprep.mubr.bf16.mxu0 0
      %728 = vmatmul.mubr.bf16.gmra.mxu0 %v450
      %v729 = vpop.f32.mrf.mxu0
      %v730 = vadd.f32 0.0, %v729
      %v731 = vpop.f32.mrf.mxu0
      %v732 = vpop.f32.mrf.mxu0
      %v733 = vadd.f32 0.0, %v732
      %v734 = vpop.f32.mrf.mxu0
      %735 = vmatprep.mubr.bf16.mxu0 0
      %736 = vmatmul.mubr.bf16.gmra.mxu0 %v451
      %v737 = vpop.f32.mrf.mxu0
      %v738 = vadd.f32 0.0, %v737
      %v739 = vpop.f32.mrf.mxu0
      %v740 = vpop.f32.mrf.mxu0
      %v741 = vadd.f32 0.0, %v740
      %v742 = vpop.f32.mrf.mxu0
      %743 = vmatprep.mubr.bf16.mxu0 0
      %744 = vmatmul.mubr.bf16.gmra.mxu0 %v452
      %v745 = vpop.f32.mrf.mxu0
      %v746 = vadd.f32 0.0, %v745
      %v747 = vpop.f32.mrf.mxu0
      %v748 = vpop.f32.mrf.mxu0
      %v749 = vadd.f32 0.0, %v748
      %v750 = vpop.f32.mrf.mxu0
      %751 = vmatprep.mubr.bf16.mxu0 0
      %752 = vmatmul.mubr.bf16.gmra.mxu0 %v453
      %v753 = vpop.f32.mrf.mxu0
      %v754 = vadd.f32 0.0, %v753
      %v755 = vpop.f32.mrf.mxu0
      %v756 = vpop.f32.mrf.mxu0
      %v757 = vadd.f32 0.0, %v756
      %v758 = vpop.f32.mrf.mxu0
      %759 = vmatprep.mubr.bf16.mxu0 0
      %760 = vmatmul.mubr.bf16.gmra.mxu0 %v454
      %v761 = vpop.f32.mrf.mxu0
      %v762 = vadd.f32 0.0, %v761
      %v763 = vpop.f32.mrf.mxu0
      %v764 = vpop.f32.mrf.mxu0
      %v765 = vadd.f32 0.0, %v764
      %v766 = vpop.f32.mrf.mxu0
      %767 = vmatprep.mubr.bf16.mxu0 0
      %768 = vmatmul.mubr.bf16.gmra.mxu0 %v455
      %v769 = vpop.f32.mrf.mxu0
      %v770 = vadd.f32 0.0, %v769
      %v771 = vpop.f32.mrf.mxu0
      %v772 = vpop.f32.mrf.mxu0
      %v773 = vadd.f32 0.0, %v772
      %v774 = vpop.f32.mrf.mxu0
      %775 = vmatprep.mubr.bf16.mxu0 0
      %776 = vmatmul.mubr.bf16.gmra.mxu0 %v456
      %v777 = vpop.f32.mrf.mxu0
      %v778 = vadd.f32 0.0, %v777
      %v779 = vpop.f32.mrf.mxu0
      %v780 = vpop.f32.mrf.mxu0
      %v781 = vadd.f32 0.0, %v780
      %v782 = vpop.f32.mrf.mxu0
      %783 = vmatprep.mubr.bf16.mxu0 0
      %784 = vmatmul.mubr.bf16.gmra.mxu0 %v457
      %v785 = vpop.f32.mrf.mxu0
      %v786 = vadd.f32 0.0, %v785
      %v787 = vpop.f32.mrf.mxu0
      %v788 = vpop.f32.mrf.mxu0
      %v789 = vadd.f32 0.0, %v788
      %v790 = vpop.f32.mrf.mxu0
      %791 = vmatprep.mubr.bf16.mxu0 0
      %792 = vmatmul.mubr.bf16.gmra.mxu0 %v458
      %v793 = vpop.f32.mrf.mxu0
      %v794 = vadd.f32 0.0, %v793
      %v795 = vpop.f32.mrf.mxu0
      %v796 = vpop.f32.mrf.mxu0
      %v797 = vadd.f32 0.0, %v796
      %v798 = vpop.f32.mrf.mxu0
      %799 = vmatprep.mubr.bf16.mxu0 0
      %800 = vmatmul.mubr.bf16.gmra.mxu0 %v459
      %v801 = vpop.f32.mrf.mxu0
      %v802 = vadd.f32 0.0, %v801
      %v803 = vpop.f32.mrf.mxu0
      %v804 = vpop.f32.mrf.mxu0
      %v805 = vadd.f32 0.0, %v804
      %v806 = vpop.f32.mrf.mxu0
      %807 = vmatprep.mubr.bf16.mxu0 0
      %808 = vmatmul.mubr.bf16.gmra.mxu0 %v460
      %v809 = vpop.f32.mrf.mxu0
      %v810 = vadd.f32 0.0, %v809
      %v811 = vpop.f32.mrf.mxu0
      %v812 = vpop.f32.mrf.mxu0
      %v813 = vadd.f32 0.0, %v812
      %v814 = vpop.f32.mrf.mxu0
      %815 = vmatprep.mubr.bf16.mxu0 0
      %816 = vmatmul.mubr.bf16.gmra.mxu0 %v461
      %v817 = vpop.f32.mrf.mxu0
      %v818 = vadd.f32 0.0, %v817
      %v819 = vpop.f32.mrf.mxu0
      %v820 = vpop.f32.mrf.mxu0
      %v821 = vadd.f32 0.0, %v820
      %v822 = vpop.f32.mrf.mxu0
      %823 = vmatprep.mubr.bf16.mxu0 0
      %824 = vmatmul.mubr.bf16.gmra.mxu0 %v462
      %v825 = vpop.f32.mrf.mxu0
      %v826 = vadd.f32 0.0, %v825
      %v827 = vpop.f32.mrf.mxu0
      %v828 = vpop.f32.mrf.mxu0
      %v829 = vadd.f32 0.0, %v828
      %v830 = vpop.f32.mrf.mxu0
      %831 = vdwg.mxu0
      %832 = vst [vmem:[%s212] sm:$0xff] %v578
      %833 = vst [vmem:[%s212 + $0x8] sm:$0xff] %v581
      %834 = vst [vmem:[%s212 + $0x10] sm:$0xff] %v586
      %835 = vst [vmem:[%s212 + $0x18] sm:$0xff] %v589
      %836 = vst [vmem:[%s212 + $0x20] sm:$0xff] %v594
      %837 = vst [vmem:[%s212 + $0x28] sm:$0xff] %v597
      %838 = vst [vmem:[%s212 + $0x30] sm:$0xff] %v602
      %839 = vst [vmem:[%s212 + $0x38] sm:$0xff] %v605
      %840 = vst [vmem:[%s212 + $0x40] sm:$0xff] %v610
      %841 = vst [vmem:[%s212 + $0x48] sm:$0xff] %v613
      %842 = vst [vmem:[%s212 + $0x50] sm:$0xff] %v618
      %843 = vst [vmem:[%s212 + $0x58] sm:$0xff] %v621
      %844 = vst [vmem:[%s212 + $0x60] sm:$0xff] %v626
      %845 = vst [vmem:[%s212 + $0x68] sm:$0xff] %v629
      %846 = vst [vmem:[%s212 + $0x70] sm:$0xff] %v634
      %847 = vst [vmem:[%s212 + $0x78] sm:$0xff] %v637
      %848 = vst [vmem:[%s212 + $0x80] sm:$0xff] %v642
      %849 = vst [vmem:[%s212 + $0x88] sm:$0xff] %v645
      %850 = vst [vmem:[%s212 + $0x90] sm:$0xff] %v650
      %851 = vst [vmem:[%s212 + $0x98] sm:$0xff] %v653
      %852 = vst [vmem:[%s212 + $0xa0] sm:$0xff] %v658
      %853 = vst [vmem:[%s212 + $0xa8] sm:$0xff] %v661
      %854 = vst [vmem:[%s212 + $0xb0] sm:$0xff] %v666
      %855 = vst [vmem:[%s212 + $0xb8] sm:$0xff] %v669
      %856 = vst [vmem:[%s212 + $0xc0] sm:$0xff] %v674
      %857 = vst [vmem:[%s212 + $0xc8] sm:$0xff] %v677
      %858 = vst [vmem:[%s212 + $0xd0] sm:$0xff] %v682
      %859 = vst [vmem:[%s212 + $0xd8] sm:$0xff] %v685
      %860 = vst [vmem:[%s212 + $0xe0] sm:$0xff] %v690
      %861 = vst [vmem:[%s212 + $0xe8] sm:$0xff] %v693
      %862 = vst [vmem:[%s212 + $0xf0] sm:$0xff] %v698
      %863 = vst [vmem:[%s212 + $0xf8] sm:$0xff] %v701
      %864 = vst [vmem:[%s212 + $0x100] sm:$0xff] %v706
      %865 = vst [vmem:[%s212 + $0x108] sm:$0xff] %v709
      %866 = vst [vmem:[%s212 + $0x110] sm:$0xff] %v714
      %867 = vst [vmem:[%s212 + $0x118] sm:$0xff] %v717
      %868 = vst [vmem:[%s212 + $0x120] sm:$0xff] %v722
      %869 = vst [vmem:[%s212 + $0x128] sm:$0xff] %v725
      %870 = vst [vmem:[%s212 + $0x130] sm:$0xff] %v730
      %871 = vst [vmem:[%s212 + $0x138] sm:$0xff] %v733
      %872 = vst [vmem:[%s212 + $0x140] sm:$0xff] %v738
      %873 = vst [vmem:[%s212 + $0x148] sm:$0xff] %v741
      %874 = vst [vmem:[%s212 + $0x150] sm:$0xff] %v746
      %875 = vst [vmem:[%s212 + $0x158] sm:$0xff] %v749
      %876 = vst [vmem:[%s212 + $0x160] sm:$0xff] %v754
      %877 = vst [vmem:[%s212 + $0x168] sm:$0xff] %v757
      %878 = vst [vmem:[%s212 + $0x170] sm:$0xff] %v762
      %879 = vst [vmem:[%s212 + $0x178] sm:$0xff] %v765
      %880 = vst [vmem:[%s212 + $0x180] sm:$0xff] %v770
      %881 = vst [vmem:[%s212 + $0x188] sm:$0xff] %v773
      %882 = vst [vmem:[%s212 + $0x190] sm:$0xff] %v778
      %883 = vst [vmem:[%s212 + $0x198] sm:$0xff] %v781
      %884 = vst [vmem:[%s212 + $0x1a0] sm:$0xff] %v786
      %885 = vst [vmem:[%s212 + $0x1a8] sm:$0xff] %v789
      %886 = vst [vmem:[%s212 + $0x1b0] sm:$0xff] %v794
      %887 = vst [vmem:[%s212 + $0x1b8] sm:$0xff] %v797
      %888 = vst [vmem:[%s212 + $0x1c0] sm:$0xff] %v802
      %889 = vst [vmem:[%s212 + $0x1c8] sm:$0xff] %v805
      %890 = vst [vmem:[%s212 + $0x1d0] sm:$0xff] %v810
      %891 = vst [vmem:[%s212 + $0x1d8] sm:$0xff] %v813
      %892 = vst [vmem:[%s212 + $0x1e0] sm:$0xff] %v818
      %893 = vst [vmem:[%s212 + $0x1e8] sm:$0xff] %v821
      %894 = vst [vmem:[%s212 + $0x1f0] sm:$0xff] %v826
      %895 = vst [vmem:[%s212 + $0x1f8] sm:$0xff] %v829
      %v896 = vadd.f32 %v578, %v581
      %v897 = vadd.f32 %v896, %v586
      %v898 = vadd.f32 %v897, %v589
      %v899 = vadd.f32 %v898, %v594
      %v900 = vadd.f32 %v899, %v597
      %v901 = vadd.f32 %v900, %v602
      %v902 = vadd.f32 %v901, %v605
      %v903 = vadd.f32 %v902, %v610
      %v904 = vadd.f32 %v903, %v613
      %v905 = vadd.f32 %v904, %v618
      %v906 = vadd.f32 %v905, %v621
      %v907 = vadd.f32 %v906, %v626
      %v908 = vadd.f32 %v907, %v629
      %v909 = vadd.f32 %v908, %v634
      %v910 = vadd.f32 %v909, %v637
      %v911 = vadd.f32 %v910, %v642
      %v912 = vadd.f32 %v911, %v645
      %v913 = vadd.f32 %v912, %v650
      %v914 = vadd.f32 %v913, %v653
      %v915 = vadd.f32 %v914, %v658
      %v916 = vadd.f32 %v915, %v661
      %v917 = vadd.f32 %v916, %v666
      %v918 = vadd.f32 %v917, %v669
      %v919 = vadd.f32 %v918, %v674
      %v920 = vadd.f32 %v919, %v677
      %v921 = vadd.f32 %v920, %v682
      %v922 = vadd.f32 %v921, %v685
      %v923 = vadd.f32 %v922, %v690
      %v924 = vadd.f32 %v923, %v693
      %v925 = vadd.f32 %v924, %v698
      %v926 = vadd.f32 %v925, %v701
      %v927 = vadd.f32 %v926, %v706
      %v928 = vadd.f32 %v927, %v709
      %v929 = vadd.f32 %v928, %v714
      %v930 = vadd.f32 %v929, %v717
      %v931 = vadd.f32 %v930, %v722
      %v932 = vadd.f32 %v931, %v725
      %v933 = vadd.f32 %v932, %v730
      %v934 = vadd.f32 %v933, %v733
      %v935 = vadd.f32 %v934, %v738
      %v936 = vadd.f32 %v935, %v741
      %v937 = vadd.f32 %v936, %v746
      %v938 = vadd.f32 %v937, %v749
      %v939 = vadd.f32 %v938, %v754
      %v940 = vadd.f32 %v939, %v757
      %v941 = vadd.f32 %v940, %v762
      %v942 = vadd.f32 %v941, %v765
      %v943 = vadd.f32 %v942, %v770
      %v944 = vadd.f32 %v943, %v773
      %v945 = vadd.f32 %v944, %v778
      %v946 = vadd.f32 %v945, %v781
      %v947 = vadd.f32 %v946, %v786
      %v948 = vadd.f32 %v947, %v789
      %v949 = vadd.f32 %v948, %v794
      %v950 = vadd.f32 %v949, %v797
      %v951 = vadd.f32 %v950, %v802
      %v952 = vadd.f32 %v951, %v805
      %v953 = vadd.f32 %v952, %v810
      %v954 = vadd.f32 %v953, %v813
      %v955 = vadd.f32 %v954, %v818
      %v956 = vadd.f32 %v955, %v821
      %v957 = vadd.f32 %v956, %v826
      %v958 = vadd.f32 %v957, %v829
      %v959 = vrot.slane %v958, 4
      %v960 = vadd.f32 %v958, %v959
      %v961 = vrot.slane %v960, 2
      %v962 = vadd.f32 %v960, %v961
      %v963 = vrot.slane %v962, 1
      %v964 = vadd.f32 %v962, %v963
      %v965 = vmul.f32 %v578, %v578
      %v966 = vmul.f32 %v581, %v581
      %v967 = vmul.f32 %v586, %v586
      %v968 = vmul.f32 %v589, %v589
      %v969 = vmul.f32 %v594, %v594
      %v970 = vmul.f32 %v597, %v597
      %v971 = vmul.f32 %v602, %v602
      %v972 = vmul.f32 %v605, %v605
      %v973 = vmul.f32 %v610, %v610
      %v974 = vmul.f32 %v613, %v613
      %v975 = vmul.f32 %v618, %v618
      %v976 = vmul.f32 %v621, %v621
      %v977 = vmul.f32 %v626, %v626
      %v978 = vmul.f32 %v629, %v629
      %v979 = vmul.f32 %v634, %v634
      %v980 = vmul.f32 %v637, %v637
      %v981 = vmul.f32 %v642, %v642
      %v982 = vmul.f32 %v645, %v645
      %v983 = vmul.f32 %v650, %v650
      %v984 = vmul.f32 %v653, %v653
      %v985 = vmul.f32 %v658, %v658
      %v986 = vmul.f32 %v661, %v661
      %v987 = vmul.f32 %v666, %v666
      %v988 = vmul.f32 %v669, %v669
      %v989 = vmul.f32 %v674, %v674
      %v990 = vmul.f32 %v677, %v677
      %v991 = vmul.f32 %v682, %v682
      %v992 = vmul.f32 %v685, %v685
      %v993 = vmul.f32 %v690, %v690
      %v994 = vmul.f32 %v693, %v693
      %v995 = vmul.f32 %v698, %v698
      %v996 = vmul.f32 %v701, %v701
      %v997 = vmul.f32 %v706, %v706
      %v998 = vmul.f32 %v709, %v709
      %v999 = vmul.f32 %v714, %v714
      %v1000 = vmul.f32 %v717, %v717
      %v1001 = vmul.f32 %v722, %v722
      %v1002 = vmul.f32 %v725, %v725
      %v1003 = vmul.f32 %v730, %v730
      %v1004 = vmul.f32 %v733, %v733
      %v1005 = vmul.f32 %v738, %v738
      %v1006 = vmul.f32 %v741, %v741
      %v1007 = vmul.f32 %v746, %v746
      %v1008 = vmul.f32 %v749, %v749
      %v1009 = vmul.f32 %v754, %v754
      %v1010 = vmul.f32 %v757, %v757
      %v1011 = vmul.f32 %v762, %v762
      %v1012 = vmul.f32 %v765, %v765
      %v1013 = vmul.f32 %v770, %v770
      %v1014 = vmul.f32 %v773, %v773
      %v1015 = vmul.f32 %v778, %v778
      %v1016 = vmul.f32 %v781, %v781
      %v1017 = vmul.f32 %v786, %v786
      %v1018 = vmul.f32 %v789, %v789
      %v1019 = vmul.f32 %v794, %v794
      %v1020 = vmul.f32 %v797, %v797
      %v1021 = vmul.f32 %v802, %v802
      %v1022 = vmul.f32 %v805, %v805
      %v1023 = vmul.f32 %v810, %v810
      %v1024 = vmul.f32 %v813, %v813
      %v1025 = vmul.f32 %v818, %v818
      %v1026 = vmul.f32 %v821, %v821
      %v1027 = vmul.f32 %v826, %v826
      %v1028 = vmul.f32 %v829, %v829
      %v1029 = vadd.f32 %v965, %v966
      %v1030 = vadd.f32 %v1029, %v967
      %v1031 = vadd.f32 %v1030, %v968
      %v1032 = vadd.f32 %v1031, %v969
      %v1033 = vadd.f32 %v1032, %v970
      %v1034 = vadd.f32 %v1033, %v971
      %v1035 = vadd.f32 %v1034, %v972
      %v1036 = vadd.f32 %v1035, %v973
      %v1037 = vadd.f32 %v1036, %v974
      %v1038 = vadd.f32 %v1037, %v975
      %v1039 = vadd.f32 %v1038, %v976
      %v1040 = vadd.f32 %v1039, %v977
      %v1041 = vadd.f32 %v1040, %v978
      %v1042 = vadd.f32 %v1041, %v979
      %v1043 = vadd.f32 %v1042, %v980
      %v1044 = vadd.f32 %v1043, %v981
      %v1045 = vadd.f32 %v1044, %v982
      %v1046 = vadd.f32 %v1045, %v983
      %v1047 = vadd.f32 %v1046, %v984
      %v1048 = vadd.f32 %v1047, %v985
      %v1049 = vadd.f32 %v1048, %v986
      %v1050 = vadd.f32 %v1049, %v987
      %v1051 = vadd.f32 %v1050, %v988
      %v1052 = vadd.f32 %v1051, %v989
      %v1053 = vadd.f32 %v1052, %v990
      %v1054 = vadd.f32 %v1053, %v991
      %v1055 = vadd.f32 %v1054, %v992
      %v1056 = vadd.f32 %v1055, %v993
      %v1057 = vadd.f32 %v1056, %v994
      %v1058 = vadd.f32 %v1057, %v995
      %v1059 = vadd.f32 %v1058, %v996
      %v1060 = vadd.f32 %v1059, %v997
      %v1061 = vadd.f32 %v1060, %v998
      %v1062 = vadd.f32 %v1061, %v999
      %v1063 = vadd.f32 %v1062, %v1000
      %v1064 = vadd.f32 %v1063, %v1001
      %v1065 = vadd.f32 %v1064, %v1002
      %v1066 = vadd.f32 %v1065, %v1003
      %v1067 = vadd.f32 %v1066, %v1004
      %v1068 = vadd.f32 %v1067, %v1005
      %v1069 = vadd.f32 %v1068, %v1006
      %v1070 = vadd.f32 %v1069, %v1007
      %v1071 = vadd.f32 %v1070, %v1008
      %v1072 = vadd.f32 %v1071, %v1009
      %v1073 = vadd.f32 %v1072, %v1010
      %v1074 = vadd.f32 %v1073, %v1011
      %v1075 = vadd.f32 %v1074, %v1012
      %v1076 = vadd.f32 %v1075, %v1013
      %v1077 = vadd.f32 %v1076, %v1014
      %v1078 = vadd.f32 %v1077, %v1015
      %v1079 = vadd.f32 %v1078, %v1016
      %v1080 = vadd.f32 %v1079, %v1017
      %v1081 = vadd.f32 %v1080, %v1018
      %v1082 = vadd.f32 %v1081, %v1019
      %v1083 = vadd.f32 %v1082, %v1020
      %v1084 = vadd.f32 %v1083, %v1021
      %v1085 = vadd.f32 %v1084, %v1022
      %v1086 = vadd.f32 %v1085, %v1023
      %v1087 = vadd.f32 %v1086, %v1024
      %v1088 = vadd.f32 %v1087, %v1025
      %v1089 = vadd.f32 %v1088, %v1026
      %v1090 = vadd.f32 %v1089, %v1027
      %v1091 = vadd.f32 %v1090, %v1028
      %v1092 = vrot.slane %v1091, 4
      %v1093 = vadd.f32 %v1091, %v1092
      %v1094 = vrot.slane %v1093, 2
      %v1095 = vadd.f32 %v1093, %v1094
      %v1096 = vrot.slane %v1095, 1
      %v1097 = vadd.f32 %v1095, %v1096
      %1098 = vst [vmem:[%s217] sm:$0xff] %v964
      %1099 = vst [vmem:[%s221] sm:$0xff] %v1097
      %s1100 = smul.u32 64, %s16
      %p1101 = scmp.lt.s32.totalorder %s1100, 127
      %s1102 = scalar_select %p1101, %s1100, 127
      %s1103 = smul.addr %s1102, 8
      %s1104 = scalar_lea.vmem %s2, %s1103
      %p1105 = scmp.lt.s32.totalorder %s16, 1
      %s1106 = scalar_select %p1105, %s16, 1
      %s1107 = smul.addr %s1106, 8
      %s1108 = scalar_lea.vmem %s3, %s1107
      %p1109 = scmp.lt.s32.totalorder %s16, 1
      %s1110 = scalar_select %p1109, %s16, 1
      %s1111 = smul.addr %s1110, 8
      %s1112 = scalar_lea.vmem %s4, %s1111
      // Predicated region
      $region29: #{conv_block_forward.2} parent=27 // pred_check
        %p1113 = pneg %p81
      $region30: #{conv_block_forward.2} parent=27 // pred_check_branch
        %1115 = sbr.rel (%p1113) target = $region32
      $region31: #{conv_block_forward.2} parent=27 // pred_region
        %s1116 = smul.u32 64, %s16
      $region32: #{conv_block_forward.2} parent=27 // pred_fallthru
        _
      // Predicated region
      $region33: #{conv_block_forward.2} parent=27 // pred_check
        %p1117 = pneg %p107
      $region34: #{conv_block_forward.2} parent=27 // pred_check_branch
        %1119 = sbr.rel (%p1117) target = $region36
      $region35: #{conv_block_forward.2} parent=27 // pred_region
        _
      $region36: #{conv_block_forward.2} parent=27 // pred_fallthru
        _
      // Predicated region
      $region37: #{conv_block_forward.2} parent=27 // pred_check
        %p1120 = pneg %p133
      $region38: #{conv_block_forward.2} parent=27 // pred_check_branch
        %1122 = sbr.rel (%p1120) target = $region40
      $region39: #{conv_block_forward.2} parent=27 // pred_region
        _
      $region40: #{conv_block_forward.2} parent=27 // pred_fallthru
        _
    $region28: #{conv_block_forward.2} parent=5 // pred_fallthru
      _
    %p1123 = scmp.le.s32.totalorder 2, %s11
    // Predicated region
    $region41: #{conv_block_forward.2} parent=5 // pred_check
      %p1124 = pneg %p1123
    $region42: #{conv_block_forward.2} parent=5 // pred_check_branch
      %1126 = sbr.rel (%p1124) target = $region44
    $region43: #{conv_block_forward.2} parent=5 // pred_region
      %s1127 = ssub.s32 %s11, 2
      // Predicated region
      $region45: #{conv_block_forward.2} parent=43 // pred_check
        %p1128 = pneg %p87
      $region46: #{conv_block_forward.2} parent=43 // pred_check_branch
        %1130 = sbr.rel (%p1128) target = $region48
      $region47: #{conv_block_forward.2} parent=43 // pred_region
        %s1131 = smul.u32 64, %s17
        %p1132 = scmp.lt.s32.totalorder %s1131, 127
        %s1133 = scalar_select %p1132, %s1131, 127
        %s1134 = smul.addr %s1133, 8
        %s1135 = scalar_lea.vmem %s2, %s1134
      $region48: #{conv_block_forward.2} parent=43 // pred_fallthru
        _
      // Predicated region
      $region49: #{conv_block_forward.2} parent=43 // pred_check
        %p1136 = pneg %p113
      $region50: #{conv_block_forward.2} parent=43 // pred_check_branch
        %1138 = sbr.rel (%p1136) target = $region52
      $region51: #{conv_block_forward.2} parent=43 // pred_region
        %p1139 = scmp.lt.s32.totalorder %s17, 1
        %s1140 = scalar_select %p1139, %s17, 1
        %s1141 = smul.addr %s1140, 8
        %s1142 = scalar_lea.vmem %s3, %s1141
      $region52: #{conv_block_forward.2} parent=43 // pred_fallthru
        _
      // Predicated region
      $region53: #{conv_block_forward.2} parent=43 // pred_check
        %p1143 = pneg %p139
      $region54: #{conv_block_forward.2} parent=43 // pred_check_branch
        %1145 = sbr.rel (%p1143) target = $region56
      $region55: #{conv_block_forward.2} parent=43 // pred_region
        %p1146 = scmp.lt.s32.totalorder %s17, 1
        %s1147 = scalar_select %p1146, %s17, 1
        %s1148 = smul.addr %s1147, 8
        %s1149 = scalar_lea.vmem %s4, %s1148
      $region56: #{conv_block_forward.2} parent=43 // pred_fallthru
        _
    $region44: #{conv_block_forward.2} parent=5 // pred_fallthru
      _
  $region6: #{conv_block_forward.2} parent=0 // loop_footer
    %s15 = sadd.s32 1, %s11
  $region7: #{conv_block_forward.2} parent=0 // loop_footer_branch
    %10 = sbr.rel target = $region3
  $region8: #{conv_block_forward.2} parent=0 // loop_exit
    _

</llo_original>
